<compile_context>
chip_gen: v7x
topology: tpu7x:2x2x1
jax: 0.10.0
libtpu: 0.0.40
codegen_flags: <defaults>
</compile_context>

<pallas_src>
import functools

import jax
import jax.numpy as jnp
from jax.experimental import pallas as pl
from jax.experimental.pallas import tpu as pltpu

LN_EPS = 1e-5


def _round_up(x, m):
    return ((x + m - 1) // m) * m


# ------------------------------ fused kernel ------------------------------

def _ffn_kernel(x_ref, g_ref, b_ref, w1_ref, b1_ref, w2_ref, b2_ref, o_ref):
    """LayerNorm -> Linear(d, H) -> Swish -> Linear(H, d), all VMEM-resident."""
    x = x_ref[...]                                        # (TM, D) float32

    # --- LayerNorm (float32, VPU + EUP rsqrt) ---
    mu = jnp.mean(x, axis=-1, keepdims=True)
    xc = x - mu
    var = jnp.mean(xc * xc, axis=-1, keepdims=True)
    xn = xc * jax.lax.rsqrt(var + LN_EPS) * g_ref[...] + b_ref[...]

    # --- Linear 1 (bf16 operands, f32 MXU accumulation) + Swish ---
    h = jnp.dot(xn.astype(jnp.bfloat16), w1_ref[...],
                preferred_element_type=jnp.float32) + b1_ref[...]
    h = h * jax.nn.sigmoid(h)                             # Swish (sigmoid on EUP)
    # TODO(synk): Dropout after Swish is train-mode only; inference = identity.

    # --- Linear 2 (bf16 operands, f32 MXU accumulation) ---
    y = jnp.dot(h.astype(jnp.bfloat16), w2_ref[...],
                preferred_element_type=jnp.float32) + b2_ref[...]
    # TODO(synk): trailing Dropout is train-mode only; inference = identity.

    o_ref[...] = y.astype(o_ref.dtype)


# ------------------------------ wrapper ------------------------------

def feed_forward(x, params, *, block_rows=256):
    """x: (B, T, D) float32. Returns (B, T, D) float32."""
    B, T, D = x.shape
    H = params["w1"].shape[1]
    M = B * T
    xf = x.reshape(M, D)

    # One big row-slab per grid step (sublane-dense); single step when small.
    tm = min(block_rows, _round_up(M, 8))
    m_pad = _round_up(M, tm)
    if m_pad != M:
        xf = jnp.pad(xf, ((0, m_pad - M), (0, 0)))

    out = pl.pallas_call(
        _ffn_kernel,
        out_shape=jax.ShapeDtypeStruct((m_pad, D), jnp.float32),
        grid=(m_pad // tm,),
        in_specs=[
            pl.BlockSpec((tm, D), lambda i: (i, 0)),      # x rows
            pl.BlockSpec((1, D), lambda i: (0, 0)),       # gamma
            pl.BlockSpec((1, D), lambda i: (0, 0)),       # beta
            pl.BlockSpec((D, H), lambda i: (0, 0)),       # w1 (bf16)
            pl.BlockSpec((1, H), lambda i: (0, 0)),       # b1
            pl.BlockSpec((H, D), lambda i: (0, 0)),       # w2 (bf16)
            pl.BlockSpec((1, D), lambda i: (0, 0)),       # b2
        ],
        out_specs=pl.BlockSpec((tm, D), lambda i: (i, 0)),
        compiler_params=pltpu.CompilerParams(
            dimension_semantics=("parallel",)),           # shards rows across TCs on v7x
    )(xf, params["gamma"], params["beta"],
      params["w1"], params["b1"], params["w2"], params["b2"])

    return out[:M].reshape(B, T, D)


# ------------------------------ reference & params ------------------------------

def feed_forward_ref(x, params):
    """Pure-JAX float32 reference (same weights; dropout = identity)."""
    g = params["gamma"].astype(jnp.float32)
    b = params["beta"].astype(jnp.float32)
    w1 = params["w1"].astype(jnp.float32)
    b1 = params["b1"].astype(jnp.float32)
    w2 = params["w2"].astype(jnp.float32)
    b2 = params["b2"].astype(jnp.float32)

    mu = jnp.mean(x, axis=-1, keepdims=True)
    var = jnp.mean((x - mu) ** 2, axis=-1, keepdims=True)
    xn = (x - mu) * jax.lax.rsqrt(var + LN_EPS) * g + b
    h = xn @ w1 + b1
    h = h * jax.nn.sigmoid(h)
    return h @ w2 + b2


def init_params(key, d_model, expansion_factor):
    """Xavier-uniform weights, zero biases, LayerNorm gamma=1 / beta=0."""
    hidden = d_model * expansion_factor
    k1, k2 = jax.random.split(key)

    def xavier(k, fan_in, fan_out):
        bound = (6.0 / (fan_in + fan_out)) ** 0.5
        w = jax.random.uniform(k, (fan_in, fan_out), jnp.float32, -bound, bound)
        return w.astype(jnp.bfloat16)   # stored bf16: halves weight DMA, native MXU path

    return dict(
        gamma=jnp.ones((1, d_model), jnp.float32),
        beta=jnp.zeros((1, d_model), jnp.float32),
        w1=xavier(k1, d_model, hidden),
        b1=jnp.zeros((1, hidden), jnp.float32),
        w2=xavier(k2, hidden, d_model),
        b2=jnp.zeros((1, d_model), jnp.float32),
    )


# ------------------------------ main ------------------------------

if __name__ == "__main__":
    # Small shapes; d_model = 128 keeps the output tile lane-dense (unmasked vst)
    # and all MXU operands (8,128)-aligned.  Inputs are (batch, time, dim).
    B, T, d_model, expansion = 2, 64, 128, 4
    key = jax.random.PRNGKey(0)
    k_x, k_p = jax.random.split(key)

    x = jax.random.normal(k_x, (B, T, d_model), jnp.float32)
    params = init_params(k_p, d_model, expansion)

    fwd = jax.jit(functools.partial(feed_forward))
    out = fwd(x, params)
    jax.block_until_ready(out)

    assert out.shape == (B, T, d_model) and out.dtype == jnp.float32

    ref = feed_forward_ref(x, params)
    assert bool(jnp.all(jnp.isfinite(out)))
    # bf16 activation casts in the kernel -> loose tolerance vs. f32 reference.
    assert bool(jnp.allclose(out, ref, atol=5e-2, rtol=5e-2))

    print("KERNEL_OK")
</pallas_src>

<mosaic_0001>
module attributes {stable_mosaic.version = 11 : i64} {
  func.func @_ffn_kernel(%arg0: i32, %arg1: memref<128x128xf32, #tpu.memory_space<vmem>>, %arg2: memref<1x128xf32, #tpu.memory_space<vmem>>, %arg3: memref<1x128xf32, #tpu.memory_space<vmem>>, %arg4: memref<128x512xbf16, #tpu.memory_space<vmem>>, %arg5: memref<1x512xf32, #tpu.memory_space<vmem>>, %arg6: memref<512x128xbf16, #tpu.memory_space<vmem>>, %arg7: memref<1x128xf32, #tpu.memory_space<vmem>>, %arg8: memref<128x128xf32, #tpu.memory_space<vmem>>) attributes {dimension_semantics = [#tpu.dimension_semantics<parallel>], iteration_bounds = array<i64: 1>, scalar_prefetch = 0 : i64, scratch_operands = 0 : i64, tpu.core_type = #tpu.core_type<tc>, window_params = [{transform_indices = @transform_0, window_bounds = array<i64: 128, 128>}, {pipeline_mode = #tpu.pipeline_mode<synchronous>, transform_indices = @transform_1, window_bounds = array<i64: 1, 128>}, {pipeline_mode = #tpu.pipeline_mode<synchronous>, transform_indices = @transform_2, window_bounds = array<i64: 1, 128>}, {pipeline_mode = #tpu.pipeline_mode<synchronous>, transform_indices = @transform_3, window_bounds = array<i64: 128, 512>}, {pipeline_mode = #tpu.pipeline_mode<synchronous>, transform_indices = @transform_4, window_bounds = array<i64: 1, 512>}, {pipeline_mode = #tpu.pipeline_mode<synchronous>, transform_indices = @transform_5, window_bounds = array<i64: 512, 128>}, {pipeline_mode = #tpu.pipeline_mode<synchronous>, transform_indices = @transform_6, window_bounds = array<i64: 1, 128>}, {transform_indices = @transform_7, window_bounds = array<i64: 128, 128>}]} {
    %c0 = arith.constant 0 : index
    %c0_0 = arith.constant 0 : index
    %0 = vector.load %arg1[%c0, %c0_0] : memref<128x128xf32, #tpu.memory_space<vmem>>, vector<128x128xf32>
    %cst = arith.constant dense<0.000000e+00> : vector<128xf32>
    %1 = vector.multi_reduction <add>, %0, %cst [1] : vector<128x128xf32> to vector<128xf32>
    %2 = vector.shape_cast %1 : vector<128xf32> to vector<128x1xf32>
    %cst_1 = arith.constant 1.280000e+02 : f32
    %3 = vector.broadcast %cst_1 : f32 to vector<128x1xf32>
    %4 = arith.divf %2, %3 : vector<128x1xf32>
    %5 = vector.broadcast %4 : vector<128x1xf32> to vector<128x128xf32>
    %6 = arith.subf %0, %5 : vector<128x128xf32>
    %7 = arith.mulf %6, %6 : vector<128x128xf32>
    %cst_2 = arith.constant dense<0.000000e+00> : vector<128xf32>
    %8 = vector.multi_reduction <add>, %7, %cst_2 [1] : vector<128x128xf32> to vector<128xf32>
    %9 = vector.shape_cast %8 : vector<128xf32> to vector<128x1xf32>
    %cst_3 = arith.constant 1.280000e+02 : f32
    %10 = vector.broadcast %cst_3 : f32 to vector<128x1xf32>
    %11 = arith.divf %9, %10 : vector<128x1xf32>
    %cst_4 = arith.constant 9.99999974E-6 : f32
    %12 = vector.broadcast %cst_4 : f32 to vector<128x1xf32>
    %13 = arith.addf %11, %12 : vector<128x1xf32>
    %14 = math.rsqrt %13 : vector<128x1xf32>
    %15 = vector.broadcast %14 : vector<128x1xf32> to vector<128x128xf32>
    %16 = arith.mulf %6, %15 : vector<128x128xf32>
    %c0_5 = arith.constant 0 : index
    %c0_6 = arith.constant 0 : index
    %17 = vector.load %arg2[%c0_5, %c0_6] : memref<1x128xf32, #tpu.memory_space<vmem>>, vector<1x128xf32>
    %18 = vector.broadcast %17 : vector<1x128xf32> to vector<128x128xf32>
    %19 = arith.mulf %16, %18 : vector<128x128xf32>
    %c0_7 = arith.constant 0 : index
    %c0_8 = arith.constant 0 : index
    %20 = vector.load %arg3[%c0_7, %c0_8] : memref<1x128xf32, #tpu.memory_space<vmem>>, vector<1x128xf32>
    %21 = vector.broadcast %20 : vector<1x128xf32> to vector<128x128xf32>
    %22 = arith.addf %19, %21 : vector<128x128xf32>
    %23 = arith.truncf %22 : vector<128x128xf32> to vector<128x128xbf16>
    %c0_9 = arith.constant 0 : index
    %c0_10 = arith.constant 0 : index
    %24 = vector.load %arg4[%c0_9, %c0_10] : memref<128x512xbf16, #tpu.memory_space<vmem>>, vector<128x512xbf16>
    %cst_11 = arith.constant dense<0.000000e+00> : vector<128x512xf32>
    %25 = tpu.matmul %23, %24, %cst_11 {dimension_numbers = #tpu.dot_dimension_numbers<[1], [0], [0], [1], [0, 0, 1, 1], [], []>} : vector<128x128xbf16>, vector<128x512xbf16>, vector<128x512xf32> -> vector<128x512xf32>
    %c0_12 = arith.constant 0 : index
    %c0_13 = arith.constant 0 : index
    %26 = vector.load %arg5[%c0_12, %c0_13] : memref<1x512xf32, #tpu.memory_space<vmem>>, vector<1x512xf32>
    %27 = vector.broadcast %26 : vector<1x512xf32> to vector<128x512xf32>
    %28 = arith.addf %25, %27 : vector<128x512xf32>
    %29 = arith.negf %28 : vector<128x512xf32>
    %30 = math.exp %29 : vector<128x512xf32>
    %cst_14 = arith.constant 1.000000e+00 : f32
    %31 = vector.broadcast %cst_14 : f32 to vector<128x512xf32>
    %32 = arith.addf %31, %30 : vector<128x512xf32>
    %33 = arith.divf %31, %32 : vector<128x512xf32>
    %34 = arith.mulf %28, %33 : vector<128x512xf32>
    %35 = arith.truncf %34 : vector<128x512xf32> to vector<128x512xbf16>
    %c0_15 = arith.constant 0 : index
    %c0_16 = arith.constant 0 : index
    %36 = vector.load %arg6[%c0_15, %c0_16] : memref<512x128xbf16, #tpu.memory_space<vmem>>, vector<512x128xbf16>
    %cst_17 = arith.constant dense<0.000000e+00> : vector<128x128xf32>
    %37 = tpu.matmul %35, %36, %cst_17 {dimension_numbers = #tpu.dot_dimension_numbers<[1], [0], [0], [1], [0, 0, 1, 1], [], []>} : vector<128x512xbf16>, vector<512x128xbf16>, vector<128x128xf32> -> vector<128x128xf32>
    %c0_18 = arith.constant 0 : index
    %c0_19 = arith.constant 0 : index
    %38 = vector.load %arg7[%c0_18, %c0_19] : memref<1x128xf32, #tpu.memory_space<vmem>>, vector<1x128xf32>
    %39 = vector.broadcast %38 : vector<1x128xf32> to vector<128x128xf32>
    %40 = arith.addf %37, %39 : vector<128x128xf32>
    %c0_20 = arith.constant 0 : index
    %c0_21 = arith.constant 0 : index
    %41 = vector.load %arg8[%c0_20, %c0_21] : memref<128x128xf32, #tpu.memory_space<vmem>>, vector<128x128xf32>
    tpu.vector_store %arg8[%c0_20, %c0_21], %40 {strides = array<i32>} : memref<128x128xf32, #tpu.memory_space<vmem>>, vector<128x128xf32>,
    return
  }
  func.func @transform_0(%arg0: i32) -> (i32, i32) {
    %c0_i32 = arith.constant 0 : i32
    %c0_i32_0 = arith.constant 0 : i32
    return %arg0, %c0_i32 : i32, i32
  }
  func.func @transform_1(%arg0: i32) -> (i32, i32) {
    %c0_i32 = arith.constant 0 : i32
    %c0_i32_0 = arith.constant 0 : i32
    %c0_i32_1 = arith.constant 0 : i32
    return %c0_i32, %c0_i32_0 : i32, i32
  }
  func.func @transform_2(%arg0: i32) -> (i32, i32) {
    %c0_i32 = arith.constant 0 : i32
    %c0_i32_0 = arith.constant 0 : i32
    %c0_i32_1 = arith.constant 0 : i32
    return %c0_i32, %c0_i32_0 : i32, i32
  }
  func.func @transform_3(%arg0: i32) -> (i32, i32) {
    %c0_i32 = arith.constant 0 : i32
    %c0_i32_0 = arith.constant 0 : i32
    %c0_i32_1 = arith.constant 0 : i32
    return %c0_i32, %c0_i32_0 : i32, i32
  }
  func.func @transform_4(%arg0: i32) -> (i32, i32) {
    %c0_i32 = arith.constant 0 : i32
    %c0_i32_0 = arith.constant 0 : i32
    %c0_i32_1 = arith.constant 0 : i32
    return %c0_i32, %c0_i32_0 : i32, i32
  }
  func.func @transform_5(%arg0: i32) -> (i32, i32) {
    %c0_i32 = arith.constant 0 : i32
    %c0_i32_0 = arith.constant 0 : i32
    %c0_i32_1 = arith.constant 0 : i32
    return %c0_i32, %c0_i32_0 : i32, i32
  }
  func.func @transform_6(%arg0: i32) -> (i32, i32) {
    %c0_i32 = arith.constant 0 : i32
    %c0_i32_0 = arith.constant 0 : i32
    %c0_i32_1 = arith.constant 0 : i32
    return %c0_i32, %c0_i32_0 : i32, i32
  }
  func.func @transform_7(%arg0: i32) -> (i32, i32) {
    %c0_i32 = arith.constant 0 : i32
    %c0_i32_0 = arith.constant 0 : i32
    return %arg0, %c0_i32 : i32, i32
  }
}

</mosaic_0001>

<llo_original>
// kernel: feed_forward.1
$region0: #{feed_forward.1}
  #allocation0 [shape = 'u32[]', space=smem, size = 0x4, offset = 0x4, fixed_abs, tag = 'smem constant byte address 0x4 - core index']
  #allocation1 [shape = 'u32[144,128]{1,0:T(1,128)}', space=vmem, size = 0x12000, scoped, tag = 'internal scratch']
  %s0 = inlined_call_operand.hbm [shape: f32[128,128], index: 0, kind: input, shape index: {}]
  %s1 = inlined_call_operand.vmem [shape: f32[1,128], index: 1, kind: input, shape index: {}]
  %s2 = inlined_call_operand.vmem [shape: f32[1,128], index: 2, kind: input, shape index: {}]
  %s3 = inlined_call_operand.hbm [shape: bf16[128,512], index: 3, kind: input, shape index: {}]
  %s4 = inlined_call_operand.vmem [shape: f32[1,512], index: 4, kind: input, shape index: {}]
  %s5 = inlined_call_operand.hbm [shape: bf16[512,128], index: 5, kind: input, shape index: {}]
  %s6 = inlined_call_operand.vmem [shape: f32[1,128], index: 6, kind: input, shape index: {}]
  %s7 = inlined_call_operand.hbm [shape: f32[128,128], index: 7, kind: output, shape index: {}]
  %s8 = sld [smem:[#allocation0]]
  $region50: #{feed_forward.1} parent=0
    _
  %s10 = ssub.s32 1, %s8
  %s11 = scalar_select 0, %s10, %s8
  $region1: #{feed_forward.1} parent=0
    #allocation2 [shape = 'u8[65536]{0}', space=vmem, size = 0x10000, scoped, tag = 'input window, operand 0, single buffered']
    #allocation3 [shape = 's32[1]{0}', space=sflag, size = 0x4, scoped, tag = 'scoped memory for feed_forward.1']
    #allocation4 [shape = 's32[1]{0}', space=sflag, size = 0x4, scoped, tag = 'scoped memory for feed_forward.1']
    #allocation5 [shape = 'u8[131072]{0}', space=vmem, size = 0x20000, scoped, tag = 'input window, operand 3, single buffered']
    #allocation6 [shape = 's32[1]{0}', space=sflag, size = 0x4, scoped, tag = 'scoped memory for feed_forward.1']
    #allocation7 [shape = 'u8[131072]{0}', space=vmem, size = 0x20000, scoped, tag = 'input window, operand 5, single buffered']
    #allocation8 [shape = 'u8[65536]{0}', space=vmem, size = 0x10000, scoped, tag = 'output window, operand 0, single buffered']
    %12 = vsyncpa [#allocation3], 0
    %13 = vsyncpa [#allocation6], 0
    %14 = vsyncpa [#allocation4], 0
    // Predicated region
    $region2: #{feed_forward.1} parent=1 // pred_check
      _
    $region3: #{feed_forward.1} parent=1 // pred_check_branch
      %16 = sbr.rel (0) target = $region5
    $region4: #{feed_forward.1} parent=1 // pred_region
      %s18 = ssub.s32 2048, 2048
      %19 = vsyncadd [#allocation3], %s18
      %s20 = sshll.u32 [#allocation2], 4
      %s21 = int_to_ptr.vmem [resolvable:$true] %s20
      %26 = dma.hbm_to_vmem [thread:$0]  %s0, 2048, %s21, [#allocation3], 128, 128, 8
    $region5: #{feed_forward.1} parent=1 // pred_fallthru
      _
    // Predicated region
    $region6: #{feed_forward.1} parent=1 // pred_check
      _
    $region7: #{feed_forward.1} parent=1 // pred_check_branch
      %28 = sbr.rel (0) target = $region9
    $region8: #{feed_forward.1} parent=1 // pred_region
      _
    $region9: #{feed_forward.1} parent=1 // pred_fallthru
      _
    // Predicated region
    $region10: #{feed_forward.1} parent=1 // pred_check
      _
    $region11: #{feed_forward.1} parent=1 // pred_check_branch
      %30 = sbr.rel (0) target = $region13
    $region12: #{feed_forward.1} parent=1 // pred_region
      _
    $region13: #{feed_forward.1} parent=1 // pred_fallthru
      _
    // Predicated region
    $region14: #{feed_forward.1} parent=1 // pred_check
      _
    $region15: #{feed_forward.1} parent=1 // pred_check_branch
      %32 = sbr.rel (0) target = $region17
    $region16: #{feed_forward.1} parent=1 // pred_region
      %s34 = ssub.s32 4096, 4096
      %35 = vsyncadd [#allocation6], %s34
      %s36 = sshll.u32 [#allocation5], 4
      %s37 = int_to_ptr.vmem [resolvable:$true] %s36
      %42 = dma.hbm_to_vmem [thread:$0]  %s3, 4096, %s37, [#allocation6], 256, 256, 16
    $region17: #{feed_forward.1} parent=1 // pred_fallthru
      _
    // Predicated region
    $region18: #{feed_forward.1} parent=1 // pred_check
      _
    $region19: #{feed_forward.1} parent=1 // pred_check_branch
      %44 = sbr.rel (0) target = $region21
    $region20: #{feed_forward.1} parent=1 // pred_region
      _
    $region21: #{feed_forward.1} parent=1 // pred_fallthru
      _
    // Predicated region
    $region22: #{feed_forward.1} parent=1 // pred_check
      _
    $region23: #{feed_forward.1} parent=1 // pred_check_branch
      %46 = sbr.rel (0) target = $region25
    $region24: #{feed_forward.1} parent=1 // pred_region
      %s48 = ssub.s32 4096, 4096
      %49 = vsyncadd [#allocation6], %s48
      %s50 = sshll.u32 [#allocation7], 4
      %s51 = int_to_ptr.vmem [resolvable:$true] %s50
      %56 = dma.hbm_to_vmem [thread:$0]  %s5, 4096, %s51, [#allocation6], 64, 64, 4
    $region25: #{feed_forward.1} parent=1 // pred_fallthru
      _
    // Predicated region
    $region26: #{feed_forward.1} parent=1 // pred_check
      _
    $region27: #{feed_forward.1} parent=1 // pred_check_branch
      %58 = sbr.rel (0) target = $region29
    $region28: #{feed_forward.1} parent=1 // pred_region
      _
    $region29: #{feed_forward.1} parent=1 // pred_fallthru
      _
    // Predicated region
    $region30: #{feed_forward.1} parent=1 // pred_check
      _
    $region31: #{feed_forward.1} parent=1 // pred_check_branch
      %60 = sbr.rel (0) target = $region33
    $region32: #{feed_forward.1} parent=1 // pred_region
      %61 = dma.done [#allocation3], 2048
    $region33: #{feed_forward.1} parent=1 // pred_fallthru
      _
    // Predicated region
    $region34: #{feed_forward.1} parent=1 // pred_check
      _
    $region35: #{feed_forward.1} parent=1 // pred_check_branch
      %63 = sbr.rel (0) target = $region37
    $region36: #{feed_forward.1} parent=1 // pred_region
      %64 = dma.done [#allocation6], 4096
    $region37: #{feed_forward.1} parent=1 // pred_fallthru
      _
    // Predicated region
    $region38: #{feed_forward.1} parent=1 // pred_check
      _
    $region39: #{feed_forward.1} parent=1 // pred_check_branch
      %66 = sbr.rel (0) target = $region41
    $region40: #{feed_forward.1} parent=1 // pred_region
      %67 = dma.done [#allocation6], 4096
    $region41: #{feed_forward.1} parent=1 // pred_fallthru
      _
    %v69 = vld [vmem:[#allocation2] sm:$0xff]
    %v70 = vld [vmem:[#allocation2 + $0x8] sm:$0xff]
    %v71 = vld [vmem:[#allocation2 + $0x10] sm:$0xff]
    %v72 = vld [vmem:[#allocation2 + $0x18] sm:$0xff]
    %v73 = vld [vmem:[#allocation2 + $0x20] sm:$0xff]
    %v74 = vld [vmem:[#allocation2 + $0x28] sm:$0xff]
    %v75 = vld [vmem:[#allocation2 + $0x30] sm:$0xff]
    %v76 = vld [vmem:[#allocation2 + $0x38] sm:$0xff]
    %v77 = vld [vmem:[#allocation2 + $0x40] sm:$0xff]
    %v78 = vld [vmem:[#allocation2 + $0x48] sm:$0xff]
    %v79 = vld [vmem:[#allocation2 + $0x50] sm:$0xff]
    %v80 = vld [vmem:[#allocation2 + $0x58] sm:$0xff]
    %v81 = vld [vmem:[#allocation2 + $0x60] sm:$0xff]
    %v82 = vld [vmem:[#allocation2 + $0x68] sm:$0xff]
    %v83 = vld [vmem:[#allocation2 + $0x70] sm:$0xff]
    %v84 = vld [vmem:[#allocation2 + $0x78] sm:$0xff]
    %85 = vadd.xlane.f32.xlu0 %v69
    %v86 = vpop.xlane.xlu0 %85
    %87 = vadd.xlane.f32.xlu0 %v70
    %v88 = vpop.xlane.xlu0 %87
    %89 = vadd.xlane.f32.xlu0 %v71
    %v90 = vpop.xlane.xlu0 %89
    %91 = vadd.xlane.f32.xlu0 %v72
    %v92 = vpop.xlane.xlu0 %91
    %93 = vadd.xlane.f32.xlu0 %v73
    %v94 = vpop.xlane.xlu0 %93
    %95 = vadd.xlane.f32.xlu0 %v74
    %v96 = vpop.xlane.xlu0 %95
    %97 = vadd.xlane.f32.xlu0 %v75
    %v98 = vpop.xlane.xlu0 %97
    %99 = vadd.xlane.f32.xlu0 %v76
    %v100 = vpop.xlane.xlu0 %99
    %101 = vadd.xlane.f32.xlu0 %v77
    %v102 = vpop.xlane.xlu0 %101
    %103 = vadd.xlane.f32.xlu0 %v78
    %v104 = vpop.xlane.xlu0 %103
    %105 = vadd.xlane.f32.xlu0 %v79
    %v106 = vpop.xlane.xlu0 %105
    %107 = vadd.xlane.f32.xlu0 %v80
    %v108 = vpop.xlane.xlu0 %107
    %109 = vadd.xlane.f32.xlu0 %v81
    %v110 = vpop.xlane.xlu0 %109
    %111 = vadd.xlane.f32.xlu0 %v82
    %v112 = vpop.xlane.xlu0 %111
    %113 = vadd.xlane.f32.xlu0 %v83
    %v114 = vpop.xlane.xlu0 %113
    %115 = vadd.xlane.f32.xlu0 %v84
    %v116 = vpop.xlane.xlu0 %115
    %v117 = vrcp.pop 128.0
    %v118 = vmul.f32 %v86, %v117
    %v119 = vmul.f32 %v88, %v117
    %v120 = vmul.f32 %v90, %v117
    %v121 = vmul.f32 %v92, %v117
    %v122 = vmul.f32 %v94, %v117
    %v123 = vmul.f32 %v96, %v117
    %v124 = vmul.f32 %v98, %v117
    %v125 = vmul.f32 %v100, %v117
    %v126 = vmul.f32 %v102, %v117
    %v127 = vmul.f32 %v104, %v117
    %v128 = vmul.f32 %v106, %v117
    %v129 = vmul.f32 %v108, %v117
    %v130 = vmul.f32 %v110, %v117
    %v131 = vmul.f32 %v112, %v117
    %v132 = vmul.f32 %v114, %v117
    %v133 = vmul.f32 %v116, %v117
    %v134 = vsub.f32 %v69, %v118
    %v135 = vsub.f32 %v70, %v119
    %v136 = vsub.f32 %v71, %v120
    %v137 = vsub.f32 %v72, %v121
    %v138 = vsub.f32 %v73, %v122
    %v139 = vsub.f32 %v74, %v123
    %v140 = vsub.f32 %v75, %v124
    %v141 = vsub.f32 %v76, %v125
    %v142 = vsub.f32 %v77, %v126
    %v143 = vsub.f32 %v78, %v127
    %v144 = vsub.f32 %v79, %v128
    %v145 = vsub.f32 %v80, %v129
    %v146 = vsub.f32 %v81, %v130
    %v147 = vsub.f32 %v82, %v131
    %v148 = vsub.f32 %v83, %v132
    %v149 = vsub.f32 %v84, %v133
    %v150 = vmul.f32 %v134, %v134
    %v151 = vmul.f32 %v135, %v135
    %v152 = vmul.f32 %v136, %v136
    %v153 = vmul.f32 %v137, %v137
    %v154 = vmul.f32 %v138, %v138
    %v155 = vmul.f32 %v139, %v139
    %v156 = vmul.f32 %v140, %v140
    %v157 = vmul.f32 %v141, %v141
    %v158 = vmul.f32 %v142, %v142
    %v159 = vmul.f32 %v143, %v143
    %v160 = vmul.f32 %v144, %v144
    %v161 = vmul.f32 %v145, %v145
    %v162 = vmul.f32 %v146, %v146
    %v163 = vmul.f32 %v147, %v147
    %v164 = vmul.f32 %v148, %v148
    %v165 = vmul.f32 %v149, %v149
    %166 = vadd.xlane.f32.xlu0 %v150
    %v167 = vpop.xlane.xlu0 %166
    %168 = vadd.xlane.f32.xlu0 %v151
    %v169 = vpop.xlane.xlu0 %168
    %170 = vadd.xlane.f32.xlu0 %v152
    %v171 = vpop.xlane.xlu0 %170
    %172 = vadd.xlane.f32.xlu0 %v153
    %v173 = vpop.xlane.xlu0 %172
    %174 = vadd.xlane.f32.xlu0 %v154
    %v175 = vpop.xlane.xlu0 %174
    %176 = vadd.xlane.f32.xlu0 %v155
    %v177 = vpop.xlane.xlu0 %176
    %178 = vadd.xlane.f32.xlu0 %v156
    %v179 = vpop.xlane.xlu0 %178
    %180 = vadd.xlane.f32.xlu0 %v157
    %v181 = vpop.xlane.xlu0 %180
    %182 = vadd.xlane.f32.xlu0 %v158
    %v183 = vpop.xlane.xlu0 %182
    %184 = vadd.xlane.f32.xlu0 %v159
    %v185 = vpop.xlane.xlu0 %184
    %186 = vadd.xlane.f32.xlu0 %v160
    %v187 = vpop.xlane.xlu0 %186
    %188 = vadd.xlane.f32.xlu0 %v161
    %v189 = vpop.xlane.xlu0 %188
    %190 = vadd.xlane.f32.xlu0 %v162
    %v191 = vpop.xlane.xlu0 %190
    %192 = vadd.xlane.f32.xlu0 %v163
    %v193 = vpop.xlane.xlu0 %192
    %194 = vadd.xlane.f32.xlu0 %v164
    %v195 = vpop.xlane.xlu0 %194
    %196 = vadd.xlane.f32.xlu0 %v165
    %v197 = vpop.xlane.xlu0 %196
    %v198 = vmul.f32 %v167, %v117
    %v199 = vmul.f32 %v169, %v117
    %v200 = vmul.f32 %v171, %v117
    %v201 = vmul.f32 %v173, %v117
    %v202 = vmul.f32 %v175, %v117
    %v203 = vmul.f32 %v177, %v117
    %v204 = vmul.f32 %v179, %v117
    %v205 = vmul.f32 %v181, %v117
    %v206 = vmul.f32 %v183, %v117
    %v207 = vmul.f32 %v185, %v117
    %v208 = vmul.f32 %v187, %v117
    %v209 = vmul.f32 %v189, %v117
    %v210 = vmul.f32 %v191, %v117
    %v211 = vmul.f32 %v193, %v117
    %v212 = vmul.f32 %v195, %v117
    %v213 = vmul.f32 %v197, %v117
    %v214 = vadd.f32 %v198, 1e-05
    %v215 = vadd.f32 %v199, 1e-05
    %v216 = vadd.f32 %v200, 1e-05
    %v217 = vadd.f32 %v201, 1e-05
    %v218 = vadd.f32 %v202, 1e-05
    %v219 = vadd.f32 %v203, 1e-05
    %v220 = vadd.f32 %v204, 1e-05
    %v221 = vadd.f32 %v205, 1e-05
    %v222 = vadd.f32 %v206, 1e-05
    %v223 = vadd.f32 %v207, 1e-05
    %v224 = vadd.f32 %v208, 1e-05
    %v225 = vadd.f32 %v209, 1e-05
    %v226 = vadd.f32 %v210, 1e-05
    %v227 = vadd.f32 %v211, 1e-05
    %v228 = vadd.f32 %v212, 1e-05
    %v229 = vadd.f32 %v213, 1e-05
    %v230 = vrsqrt.pop %v214
    %v231 = vrsqrt.pop %v215
    %v232 = vrsqrt.pop %v216
    %v233 = vrsqrt.pop %v217
    %v234 = vrsqrt.pop %v218
    %v235 = vrsqrt.pop %v219
    %v236 = vrsqrt.pop %v220
    %v237 = vrsqrt.pop %v221
    %v238 = vrsqrt.pop %v222
    %v239 = vrsqrt.pop %v223
    %v240 = vrsqrt.pop %v224
    %v241 = vrsqrt.pop %v225
    %v242 = vrsqrt.pop %v226
    %v243 = vrsqrt.pop %v227
    %v244 = vrsqrt.pop %v228
    %v245 = vrsqrt.pop %v229
    %v246 = vmul.f32 %v134, %v230
    %v247 = vmul.f32 %v135, %v231
    %v248 = vmul.f32 %v136, %v232
    %v249 = vmul.f32 %v137, %v233
    %v250 = vmul.f32 %v138, %v234
    %v251 = vmul.f32 %v139, %v235
    %v252 = vmul.f32 %v140, %v236
    %v253 = vmul.f32 %v141, %v237
    %v254 = vmul.f32 %v142, %v238
    %v255 = vmul.f32 %v143, %v239
    %v256 = vmul.f32 %v144, %v240
    %v257 = vmul.f32 %v145, %v241
    %v258 = vmul.f32 %v146, %v242
    %v259 = vmul.f32 %v147, %v243
    %v260 = vmul.f32 %v148, %v244
    %v261 = vmul.f32 %v149, %v245
    %v262 = vld [vmem:[%s1] sm:$0x1]
    %v264 = vlaneseq
    %v265 = vshrl.u32 %v264, 7
    %v266 = vsub.s32 0, %v265
    %v267 = vrot.slane %v262, %v266
    %v269 = vmul.f32 %v246, %v267
    %v270 = vmul.f32 %v247, %v267
    %v271 = vmul.f32 %v248, %v267
    %v272 = vmul.f32 %v249, %v267
    %v273 = vmul.f32 %v250, %v267
    %v274 = vmul.f32 %v251, %v267
    %v275 = vmul.f32 %v252, %v267
    %v276 = vmul.f32 %v253, %v267
    %v277 = vmul.f32 %v254, %v267
    %v278 = vmul.f32 %v255, %v267
    %v279 = vmul.f32 %v256, %v267
    %v280 = vmul.f32 %v257, %v267
    %v281 = vmul.f32 %v258, %v267
    %v282 = vmul.f32 %v259, %v267
    %v283 = vmul.f32 %v260, %v267
    %v284 = vmul.f32 %v261, %v267
    %v285 = vld [vmem:[%s2] sm:$0x1]
    %v287 = vlaneseq
    %v288 = vshrl.u32 %v287, 7
    %v289 = vsub.s32 0, %v288
    %v290 = vrot.slane %v285, %v289
    %v292 = vadd.f32 %v269, %v290
    %v293 = vadd.f32 %v270, %v290
    %v294 = vadd.f32 %v271, %v290
    %v295 = vadd.f32 %v272, %v290
    %v296 = vadd.f32 %v273, %v290
    %v297 = vadd.f32 %v274, %v290
    %v298 = vadd.f32 %v275, %v290
    %v299 = vadd.f32 %v276, %v290
    %v300 = vadd.f32 %v277, %v290
    %v301 = vadd.f32 %v278, %v290
    %v302 = vadd.f32 %v279, %v290
    %v303 = vadd.f32 %v280, %v290
    %v304 = vadd.f32 %v281, %v290
    %v305 = vadd.f32 %v282, %v290
    %v306 = vadd.f32 %v283, %v290
    %v307 = vadd.f32 %v284, %v290
    %v308 = vpack.c.bf16 %v293, %v292
    %v309 = vpack.c.bf16 %v295, %v294
    %v310 = vpack.c.bf16 %v297, %v296
    %v311 = vpack.c.bf16 %v299, %v298
    %v312 = vpack.c.bf16 %v301, %v300
    %v313 = vpack.c.bf16 %v303, %v302
    %v314 = vpack.c.bf16 %v305, %v304
    %v315 = vpack.c.bf16 %v307, %v306
    %v316 = vld [vmem:[#allocation5] sm:$0xff]
    %v317 = vld [vmem:[#allocation5 + $0x8] sm:$0xff]
    %v318 = vld [vmem:[#allocation5 + $0x10] sm:$0xff]
    %v319 = vld [vmem:[#allocation5 + $0x18] sm:$0xff]
    %v320 = vld [vmem:[#allocation5 + $0x20] sm:$0xff]
    %v321 = vld [vmem:[#allocation5 + $0x28] sm:$0xff]
    %v322 = vld [vmem:[#allocation5 + $0x30] sm:$0xff]
    %v323 = vld [vmem:[#allocation5 + $0x38] sm:$0xff]
    %v324 = vld [vmem:[#allocation5 + $0x40] sm:$0xff]
    %v325 = vld [vmem:[#allocation5 + $0x48] sm:$0xff]
    %v326 = vld [vmem:[#allocation5 + $0x50] sm:$0xff]
    %v327 = vld [vmem:[#allocation5 + $0x58] sm:$0xff]
    %v328 = vld [vmem:[#allocation5 + $0x60] sm:$0xff]
    %v329 = vld [vmem:[#allocation5 + $0x68] sm:$0xff]
    %v330 = vld [vmem:[#allocation5 + $0x70] sm:$0xff]
    %v331 = vld [vmem:[#allocation5 + $0x78] sm:$0xff]
    %v332 = vld [vmem:[#allocation5 + $0x80] sm:$0xff]
    %v333 = vld [vmem:[#allocation5 + $0x88] sm:$0xff]
    %v334 = vld [vmem:[#allocation5 + $0x90] sm:$0xff]
    %v335 = vld [vmem:[#allocation5 + $0x98] sm:$0xff]
    %v336 = vld [vmem:[#allocation5 + $0xa0] sm:$0xff]
    %v337 = vld [vmem:[#allocation5 + $0xa8] sm:$0xff]
    %v338 = vld [vmem:[#allocation5 + $0xb0] sm:$0xff]
    %v339 = vld [vmem:[#allocation5 + $0xb8] sm:$0xff]
    %v340 = vld [vmem:[#allocation5 + $0xc0] sm:$0xff]
    %v341 = vld [vmem:[#allocation5 + $0xc8] sm:$0xff]
    %v342 = vld [vmem:[#allocation5 + $0xd0] sm:$0xff]
    %v343 = vld [vmem:[#allocation5 + $0xd8] sm:$0xff]
    %v344 = vld [vmem:[#allocation5 + $0xe0] sm:$0xff]
    %v345 = vld [vmem:[#allocation5 + $0xe8] sm:$0xff]
    %v346 = vld [vmem:[#allocation5 + $0xf0] sm:$0xff]
    %v347 = vld [vmem:[#allocation5 + $0xf8] sm:$0xff]
    %v348 = vld [vmem:[%s4] sm:$0xf]
    %v350 = vlaneseq
    %v351 = vshrl.u32 %v350, 7
    %v352 = vsub.s32 0, %v351
    %v353 = vrot.slane %v348, %v352
    %v354 = vlaneseq
    %v355 = vshrl.u32 %v354, 7
    %v356 = vsub.s32 1, %v355
    %v357 = vrot.slane %v348, %v356
    %v358 = vlaneseq
    %v359 = vshrl.u32 %v358, 7
    %v360 = vsub.s32 2, %v359
    %v361 = vrot.slane %v348, %v360
    %v362 = vlaneseq
    %v363 = vshrl.u32 %v362, 7
    %v364 = vsub.s32 3, %v363
    %v365 = vrot.slane %v348, %v364
    %v402 = vunpack.c.l.b16 %v316
    %v403 = vunpack.c.h.b16 %v316
    %v404 = vunpack.c.l.b16 %v317
    %v405 = vunpack.c.h.b16 %v317
    %v406 = vunpack.c.l.b16 %v318
    %v407 = vunpack.c.h.b16 %v318
    %v408 = vunpack.c.l.b16 %v319
    %v409 = vunpack.c.h.b16 %v319
    %v410 = vunpack.c.l.b16 %v320
    %v411 = vunpack.c.h.b16 %v320
    %v412 = vunpack.c.l.b16 %v321
    %v413 = vunpack.c.h.b16 %v321
    %v414 = vunpack.c.l.b16 %v322
    %v415 = vunpack.c.h.b16 %v322
    %v416 = vunpack.c.l.b16 %v323
    %v417 = vunpack.c.h.b16 %v323
    %v418 = vunpack.c.l.b16 %v324
    %v419 = vunpack.c.h.b16 %v324
    %v420 = vunpack.c.l.b16 %v325
    %v421 = vunpack.c.h.b16 %v325
    %v422 = vunpack.c.l.b16 %v326
    %v423 = vunpack.c.h.b16 %v326
    %v424 = vunpack.c.l.b16 %v327
    %v425 = vunpack.c.h.b16 %v327
    %v426 = vunpack.c.l.b16 %v328
    %v427 = vunpack.c.h.b16 %v328
    %v428 = vunpack.c.l.b16 %v329
    %v429 = vunpack.c.h.b16 %v329
    %v430 = vunpack.c.l.b16 %v330
    %v431 = vunpack.c.h.b16 %v330
    %v432 = vunpack.c.l.b16 %v331
    %v433 = vunpack.c.h.b16 %v331
    %v434 = vunpack.c.l.b16 %v332
    %v435 = vunpack.c.h.b16 %v332
    %v436 = vunpack.c.l.b16 %v333
    %v437 = vunpack.c.h.b16 %v333
    %v438 = vunpack.c.l.b16 %v334
    %v439 = vunpack.c.h.b16 %v334
    %v440 = vunpack.c.l.b16 %v335
    %v441 = vunpack.c.h.b16 %v335
    %v442 = vunpack.c.l.b16 %v336
    %v443 = vunpack.c.h.b16 %v336
    %v444 = vunpack.c.l.b16 %v337
    %v445 = vunpack.c.h.b16 %v337
    %v446 = vunpack.c.l.b16 %v338
    %v447 = vunpack.c.h.b16 %v338
    %v448 = vunpack.c.l.b16 %v339
    %v449 = vunpack.c.h.b16 %v339
    %v450 = vunpack.c.l.b16 %v340
    %v451 = vunpack.c.h.b16 %v340
    %v452 = vunpack.c.l.b16 %v341
    %v453 = vunpack.c.h.b16 %v341
    %v454 = vunpack.c.l.b16 %v342
    %v455 = vunpack.c.h.b16 %v342
    %v456 = vunpack.c.l.b16 %v343
    %v457 = vunpack.c.h.b16 %v343
    %v458 = vunpack.c.l.b16 %v344
    %v459 = vunpack.c.h.b16 %v344
    %v460 = vunpack.c.l.b16 %v345
    %v461 = vunpack.c.h.b16 %v345
    %v462 = vunpack.c.l.b16 %v346
    %v463 = vunpack.c.h.b16 %v346
    %v464 = vunpack.c.l.b16 %v347
    %v465 = vunpack.c.h.b16 %v347
    %v466 = vpack.c.b16 %v406, %v402
    %v467 = vpack.c.b16 %v407, %v403
    %v468 = vpack.c.b16 %v408, %v404
    %v469 = vpack.c.b16 %v409, %v405
    %v470 = vpack.c.b16 %v414, %v410
    %v471 = vpack.c.b16 %v415, %v411
    %v472 = vpack.c.b16 %v416, %v412
    %v473 = vpack.c.b16 %v417, %v413
    %v474 = vpack.c.b16 %v422, %v418
    %v475 = vpack.c.b16 %v423, %v419
    %v476 = vpack.c.b16 %v424, %v420
    %v477 = vpack.c.b16 %v425, %v421
    %v478 = vpack.c.b16 %v430, %v426
    %v479 = vpack.c.b16 %v431, %v427
    %v480 = vpack.c.b16 %v432, %v428
    %v481 = vpack.c.b16 %v433, %v429
    %v482 = vpack.c.b16 %v438, %v434
    %v483 = vpack.c.b16 %v439, %v435
    %v484 = vpack.c.b16 %v440, %v436
    %v485 = vpack.c.b16 %v441, %v437
    %v486 = vpack.c.b16 %v446, %v442
    %v487 = vpack.c.b16 %v447, %v443
    %v488 = vpack.c.b16 %v448, %v444
    %v489 = vpack.c.b16 %v449, %v445
    %v490 = vpack.c.b16 %v454, %v450
    %v491 = vpack.c.b16 %v455, %v451
    %v492 = vpack.c.b16 %v456, %v452
    %v493 = vpack.c.b16 %v457, %v453
    %v494 = vpack.c.b16 %v462, %v458
    %v495 = vpack.c.b16 %v463, %v459
    %v496 = vpack.c.b16 %v464, %v460
    %v497 = vpack.c.b16 %v465, %v461
    %530 = vmatprep.subr.bf16.mxu0 %v467
    %531 = vmatpush1.bf16.msra.mxu0 %v466
    %532 = vmatprep.subr.bf16.mxu0 %v471
    %533 = vmatpush1.bf16.msra.mxu0 %v470
    %534 = vmatprep.subr.bf16.mxu0 %v475
    %535 = vmatpush1.bf16.msra.mxu0 %v474
    %536 = vmatprep.subr.bf16.mxu0 %v479
    %537 = vmatpush1.bf16.msra.mxu0 %v478
    %538 = vmatprep.subr.bf16.mxu0 %v483
    %539 = vmatpush1.bf16.msra.mxu0 %v482
    %540 = vmatprep.subr.bf16.mxu0 %v487
    %541 = vmatpush1.bf16.msra.mxu0 %v486
    %542 = vmatprep.subr.bf16.mxu0 %v491
    %543 = vmatpush1.bf16.msra.mxu0 %v490
    %544 = vmatprep.subr.bf16.mxu0 %v495
    %545 = vmatpush1.bf16.msra.mxu0 %v494
    %546 = vmatprep.subr.bf16.mxu0 0
    %547 = vmatpush1.bf16.msra.mxu0 0
    %548 = vmatprep.subr.bf16.mxu0 0
    %549 = vmatpush1.bf16.msra.mxu0 0
    %550 = vmatprep.subr.bf16.mxu0 0
    %551 = vmatpush1.bf16.msra.mxu0 0
    %552 = vmatprep.subr.bf16.mxu0 0
    %553 = vmatpush1.bf16.msra.mxu0 0
    %554 = vmatprep.subr.bf16.mxu0 0
    %555 = vmatpush1.bf16.msra.mxu0 0
    %556 = vmatprep.subr.bf16.mxu0 0
    %557 = vmatpush1.bf16.msra.mxu0 0
    %558 = vmatprep.subr.bf16.mxu0 0
    %559 = vmatpush1.bf16.msra.mxu0 0
    %560 = vmatprep.subr.bf16.mxu0 0
    %561 = vmatpush1.bf16.msra.mxu0 0
    %562 = vmatprep.mubr.bf16.mxu0 0
    %563 = vmatmul.mubr.bf16.gmra.mrb[0].mxu0 %v308
    %v564 = vpop.f32.mrb[0].mxu0
    %v565 = vadd.f32 %v353, %v564
    %v566 = vpop.f32.mrb[0].mxu0
    %v567 = vadd.f32 %v357, %v566
    %v568 = vpop.f32.mrb[0].mxu0
    %v569 = vadd.f32 %v353, %v568
    %v570 = vpop.f32.mrb[0].mxu0
    %v571 = vadd.f32 %v357, %v570
    %572 = vmatprep.mubr.bf16.mxu0 0
    %573 = vmatmul.mubr.bf16.gmra.mrb[0].mxu0 %v309
    %v574 = vpop.f32.mrb[0].mxu0
    %v575 = vadd.f32 %v353, %v574
    %v576 = vpop.f32.mrb[0].mxu0
    %v577 = vadd.f32 %v357, %v576
    %v578 = vpop.f32.mrb[0].mxu0
    %v579 = vadd.f32 %v353, %v578
    %v580 = vpop.f32.mrb[0].mxu0
    %v581 = vadd.f32 %v357, %v580
    %582 = vmatprep.mubr.bf16.mxu0 0
    %583 = vmatmul.mubr.bf16.gmra.mrb[0].mxu0 %v310
    %v584 = vpop.f32.mrb[0].mxu0
    %v585 = vadd.f32 %v353, %v584
    %v586 = vpop.f32.mrb[0].mxu0
    %v587 = vadd.f32 %v357, %v586
    %v588 = vpop.f32.mrb[0].mxu0
    %v589 = vadd.f32 %v353, %v588
    %v590 = vpop.f32.mrb[0].mxu0
    %v591 = vadd.f32 %v357, %v590
    %592 = vmatprep.mubr.bf16.mxu0 0
    %593 = vmatmul.mubr.bf16.gmra.mrb[0].mxu0 %v311
    %v594 = vpop.f32.mrb[0].mxu0
    %v595 = vadd.f32 %v353, %v594
    %v596 = vpop.f32.mrb[0].mxu0
    %v597 = vadd.f32 %v357, %v596
    %v598 = vpop.f32.mrb[0].mxu0
    %v599 = vadd.f32 %v353, %v598
    %v600 = vpop.f32.mrb[0].mxu0
    %v601 = vadd.f32 %v357, %v600
    %602 = vmatprep.mubr.bf16.mxu0 0
    %603 = vmatmul.mubr.bf16.gmra.mrb[0].mxu0 %v312
    %v604 = vpop.f32.mrb[0].mxu0
    %v605 = vadd.f32 %v353, %v604
    %v606 = vpop.f32.mrb[0].mxu0
    %v607 = vadd.f32 %v357, %v606
    %v608 = vpop.f32.mrb[0].mxu0
    %v609 = vadd.f32 %v353, %v608
    %v610 = vpop.f32.mrb[0].mxu0
    %v611 = vadd.f32 %v357, %v610
    %612 = vmatprep.mubr.bf16.mxu0 0
    %613 = vmatmul.mubr.bf16.gmra.mrb[0].mxu0 %v313
    %v614 = vpop.f32.mrb[0].mxu0
    %v615 = vadd.f32 %v353, %v614
    %v616 = vpop.f32.mrb[0].mxu0
    %v617 = vadd.f32 %v357, %v616
    %v618 = vpop.f32.mrb[0].mxu0
    %v619 = vadd.f32 %v353, %v618
    %v620 = vpop.f32.mrb[0].mxu0
    %v621 = vadd.f32 %v357, %v620
    %622 = vmatprep.mubr.bf16.mxu0 0
    %623 = vmatmul.mubr.bf16.gmra.mrb[0].mxu0 %v314
    %v624 = vpop.f32.mrb[0].mxu0
    %v625 = vadd.f32 %v353, %v624
    %v626 = vpop.f32.mrb[0].mxu0
    %v627 = vadd.f32 %v357, %v626
    %v628 = vpop.f32.mrb[0].mxu0
    %v629 = vadd.f32 %v353, %v628
    %v630 = vpop.f32.mrb[0].mxu0
    %v631 = vadd.f32 %v357, %v630
    %632 = vmatprep.mubr.bf16.mxu0 0
    %633 = vmatmul.mubr.bf16.gmra.mrb[0].mxu0 %v315
    %v634 = vpop.f32.mrb[0].mxu0
    %v635 = vadd.f32 %v353, %v634
    %v636 = vpop.f32.mrb[0].mxu0
    %v637 = vadd.f32 %v357, %v636
    %v638 = vpop.f32.mrb[0].mxu0
    %v639 = vadd.f32 %v353, %v638
    %v640 = vpop.f32.mrb[0].mxu0
    %v641 = vadd.f32 %v357, %v640
    %642 = vdwg.mxu0
    %643 = vmatprep.subr.bf16.mxu0 %v469
    %644 = vmatpush1.bf16.msra.mxu0 %v468
    %645 = vmatprep.subr.bf16.mxu0 %v473
    %646 = vmatpush1.bf16.msra.mxu0 %v472
    %647 = vmatprep.subr.bf16.mxu0 %v477
    %648 = vmatpush1.bf16.msra.mxu0 %v476
    %649 = vmatprep.subr.bf16.mxu0 %v481
    %650 = vmatpush1.bf16.msra.mxu0 %v480
    %651 = vmatprep.subr.bf16.mxu0 %v485
    %652 = vmatpush1.bf16.msra.mxu0 %v484
    %653 = vmatprep.subr.bf16.mxu0 %v489
    %654 = vmatpush1.bf16.msra.mxu0 %v488
    %655 = vmatprep.subr.bf16.mxu0 %v493
    %656 = vmatpush1.bf16.msra.mxu0 %v492
    %657 = vmatprep.subr.bf16.mxu0 %v497
    %658 = vmatpush1.bf16.msra.mxu0 %v496
    %659 = vmatprep.subr.bf16.mxu0 0
    %660 = vmatpush1.bf16.msra.mxu0 0
    %661 = vmatprep.subr.bf16.mxu0 0
    %662 = vmatpush1.bf16.msra.mxu0 0
    %663 = vmatprep.subr.bf16.mxu0 0
    %664 = vmatpush1.bf16.msra.mxu0 0
    %665 = vmatprep.subr.bf16.mxu0 0
    %666 = vmatpush1.bf16.msra.mxu0 0
    %667 = vmatprep.subr.bf16.mxu0 0
    %668 = vmatpush1.bf16.msra.mxu0 0
    %669 = vmatprep.subr.bf16.mxu0 0
    %670 = vmatpush1.bf16.msra.mxu0 0
    %671 = vmatprep.subr.bf16.mxu0 0
    %672 = vmatpush1.bf16.msra.mxu0 0
    %673 = vmatprep.subr.bf16.mxu0 0
    %674 = vmatpush1.bf16.msra.mxu0 0
    %675 = vmatprep.mubr.bf16.mxu0 0
    %676 = vmatmul.mubr.bf16.gmra.mrb[0].mxu0 %v308
    %v677 = vpop.f32.mrb[0].mxu0
    %v678 = vadd.f32 %v361, %v677
    %v679 = vpop.f32.mrb[0].mxu0
    %v680 = vadd.f32 %v365, %v679
    %v681 = vpop.f32.mrb[0].mxu0
    %v682 = vadd.f32 %v361, %v681
    %v683 = vpop.f32.mrb[0].mxu0
    %v684 = vadd.f32 %v365, %v683
    %685 = vmatprep.mubr.bf16.mxu0 0
    %686 = vmatmul.mubr.bf16.gmra.mrb[0].mxu0 %v309
    %v687 = vpop.f32.mrb[0].mxu0
    %v688 = vadd.f32 %v361, %v687
    %v689 = vpop.f32.mrb[0].mxu0
    %v690 = vadd.f32 %v365, %v689
    %v691 = vpop.f32.mrb[0].mxu0
    %v692 = vadd.f32 %v361, %v691
    %v693 = vpop.f32.mrb[0].mxu0
    %v694 = vadd.f32 %v365, %v693
    %695 = vmatprep.mubr.bf16.mxu0 0
    %696 = vmatmul.mubr.bf16.gmra.mrb[0].mxu0 %v310
    %v697 = vpop.f32.mrb[0].mxu0
    %v698 = vadd.f32 %v361, %v697
    %v699 = vpop.f32.mrb[0].mxu0
    %v700 = vadd.f32 %v365, %v699
    %v701 = vpop.f32.mrb[0].mxu0
    %v702 = vadd.f32 %v361, %v701
    %v703 = vpop.f32.mrb[0].mxu0
    %v704 = vadd.f32 %v365, %v703
    %705 = vmatprep.mubr.bf16.mxu0 0
    %706 = vmatmul.mubr.bf16.gmra.mrb[0].mxu0 %v311
    %v707 = vpop.f32.mrb[0].mxu0
    %v708 = vadd.f32 %v361, %v707
    %v709 = vpop.f32.mrb[0].mxu0
    %v710 = vadd.f32 %v365, %v709
    %v711 = vpop.f32.mrb[0].mxu0
    %v712 = vadd.f32 %v361, %v711
    %v713 = vpop.f32.mrb[0].mxu0
    %v714 = vadd.f32 %v365, %v713
    %715 = vmatprep.mubr.bf16.mxu0 0
    %716 = vmatmul.mubr.bf16.gmra.mrb[0].mxu0 %v312
    %v717 = vpop.f32.mrb[0].mxu0
    %v718 = vadd.f32 %v361, %v717
    %v719 = vpop.f32.mrb[0].mxu0
    %v720 = vadd.f32 %v365, %v719
    %v721 = vpop.f32.mrb[0].mxu0
    %v722 = vadd.f32 %v361, %v721
    %v723 = vpop.f32.mrb[0].mxu0
    %v724 = vadd.f32 %v365, %v723
    %725 = vmatprep.mubr.bf16.mxu0 0
    %726 = vmatmul.mubr.bf16.gmra.mrb[0].mxu0 %v313
    %v727 = vpop.f32.mrb[0].mxu0
    %v728 = vadd.f32 %v361, %v727
    %v729 = vpop.f32.mrb[0].mxu0
    %v730 = vadd.f32 %v365, %v729
    %v731 = vpop.f32.mrb[0].mxu0
    %v732 = vadd.f32 %v361, %v731
    %v733 = vpop.f32.mrb[0].mxu0
    %v734 = vadd.f32 %v365, %v733
    %735 = vmatprep.mubr.bf16.mxu0 0
    %736 = vmatmul.mubr.bf16.gmra.mrb[0].mxu0 %v314
    %v737 = vpop.f32.mrb[0].mxu0
    %v738 = vadd.f32 %v361, %v737
    %v739 = vpop.f32.mrb[0].mxu0
    %v740 = vadd.f32 %v365, %v739
    %v741 = vpop.f32.mrb[0].mxu0
    %v742 = vadd.f32 %v361, %v741
    %v743 = vpop.f32.mrb[0].mxu0
    %v744 = vadd.f32 %v365, %v743
    %745 = vmatprep.mubr.bf16.mxu0 0
    %746 = vmatmul.mubr.bf16.gmra.mrb[0].mxu0 %v315
    %v747 = vpop.f32.mrb[0].mxu0
    %v748 = vadd.f32 %v361, %v747
    %v749 = vpop.f32.mrb[0].mxu0
    %v750 = vadd.f32 %v365, %v749
    %v751 = vpop.f32.mrb[0].mxu0
    %v752 = vadd.f32 %v361, %v751
    %v753 = vpop.f32.mrb[0].mxu0
    %v754 = vadd.f32 %v365, %v753
    %755 = vdwg.mxu0
    %v756 = vxor.u32 %v565, 2147483648
    %v757 = vxor.u32 %v567, 2147483648
    %v758 = vxor.u32 %v678, 2147483648
    %v759 = vxor.u32 %v680, 2147483648
    %v760 = vxor.u32 %v569, 2147483648
    %v761 = vxor.u32 %v571, 2147483648
    %v762 = vxor.u32 %v682, 2147483648
    %v763 = vxor.u32 %v684, 2147483648
    %v764 = vxor.u32 %v575, 2147483648
    %v765 = vxor.u32 %v577, 2147483648
    %v766 = vxor.u32 %v688, 2147483648
    %v767 = vxor.u32 %v690, 2147483648
    %v768 = vxor.u32 %v579, 2147483648
    %v769 = vxor.u32 %v581, 2147483648
    %v770 = vxor.u32 %v692, 2147483648
    %v771 = vxor.u32 %v694, 2147483648
    %v772 = vxor.u32 %v585, 2147483648
    %v773 = vxor.u32 %v587, 2147483648
    %v774 = vxor.u32 %v698, 2147483648
    %v775 = vxor.u32 %v700, 2147483648
    %v776 = vxor.u32 %v589, 2147483648
    %v777 = vxor.u32 %v591, 2147483648
    %v778 = vxor.u32 %v702, 2147483648
    %v779 = vxor.u32 %v704, 2147483648
    %v780 = vxor.u32 %v595, 2147483648
    %v781 = vxor.u32 %v597, 2147483648
    %v782 = vxor.u32 %v708, 2147483648
    %v783 = vxor.u32 %v710, 2147483648
    %v784 = vxor.u32 %v599, 2147483648
    %v785 = vxor.u32 %v601, 2147483648
    %v786 = vxor.u32 %v712, 2147483648
    %v787 = vxor.u32 %v714, 2147483648
    %v788 = vxor.u32 %v605, 2147483648
    %v789 = vxor.u32 %v607, 2147483648
    %v790 = vxor.u32 %v718, 2147483648
    %v791 = vxor.u32 %v720, 2147483648
    %v792 = vxor.u32 %v609, 2147483648
    %v793 = vxor.u32 %v611, 2147483648
    %v794 = vxor.u32 %v722, 2147483648
    %v795 = vxor.u32 %v724, 2147483648
    %v796 = vxor.u32 %v615, 2147483648
    %v797 = vxor.u32 %v617, 2147483648
    %v798 = vxor.u32 %v728, 2147483648
    %v799 = vxor.u32 %v730, 2147483648
    %v800 = vxor.u32 %v619, 2147483648
    %v801 = vxor.u32 %v621, 2147483648
    %v802 = vxor.u32 %v732, 2147483648
    %v803 = vxor.u32 %v734, 2147483648
    %v804 = vxor.u32 %v625, 2147483648
    %v805 = vxor.u32 %v627, 2147483648
    %v806 = vxor.u32 %v738, 2147483648
    %v807 = vxor.u32 %v740, 2147483648
    %v808 = vxor.u32 %v629, 2147483648
    %v809 = vxor.u32 %v631, 2147483648
    %v810 = vxor.u32 %v742, 2147483648
    %v811 = vxor.u32 %v744, 2147483648
    %v812 = vxor.u32 %v635, 2147483648
    %v813 = vxor.u32 %v637, 2147483648
    %v814 = vxor.u32 %v748, 2147483648
    %v815 = vxor.u32 %v750, 2147483648
    %v816 = vxor.u32 %v639, 2147483648
    %v817 = vxor.u32 %v641, 2147483648
    %v818 = vxor.u32 %v752, 2147483648
    %v819 = vxor.u32 %v754, 2147483648
    %v820 = vmul.f32 %v756, 1.442695
    %v821 = vpow.pop %v820
    %v822 = vmul.f32 %v757, 1.442695
    %v823 = vpow.pop %v822
    %v824 = vmul.f32 %v758, 1.442695
    %v825 = vpow.pop %v824
    %v826 = vmul.f32 %v759, 1.442695
    %v827 = vpow.pop %v826
    %v828 = vmul.f32 %v760, 1.442695
    %v829 = vpow.pop %v828
    %v830 = vmul.f32 %v761, 1.442695
    %v831 = vpow.pop %v830
    %v832 = vmul.f32 %v762, 1.442695
    %v833 = vpow.pop %v832
    %v834 = vmul.f32 %v763, 1.442695
    %v835 = vpow.pop %v834
    %v836 = vmul.f32 %v764, 1.442695
    %v837 = vpow.pop %v836
    %v838 = vmul.f32 %v765, 1.442695
    %v839 = vpow.pop %v838
    %v840 = vmul.f32 %v766, 1.442695
    %v841 = vpow.pop %v840
    %v842 = vmul.f32 %v767, 1.442695
    %v843 = vpow.pop %v842
    %v844 = vmul.f32 %v768, 1.442695
    %v845 = vpow.pop %v844
    %v846 = vmul.f32 %v769, 1.442695
    %v847 = vpow.pop %v846
    %v848 = vmul.f32 %v770, 1.442695
    %v849 = vpow.pop %v848
    %v850 = vmul.f32 %v771, 1.442695
    %v851 = vpow.pop %v850
    %v852 = vmul.f32 %v772, 1.442695
    %v853 = vpow.pop %v852
    %v854 = vmul.f32 %v773, 1.442695
    %v855 = vpow.pop %v854
    %v856 = vmul.f32 %v774, 1.442695
    %v857 = vpow.pop %v856
    %v858 = vmul.f32 %v775, 1.442695
    %v859 = vpow.pop %v858
    %v860 = vmul.f32 %v776, 1.442695
    %v861 = vpow.pop %v860
    %v862 = vmul.f32 %v777, 1.442695
    %v863 = vpow.pop %v862
    %v864 = vmul.f32 %v778, 1.442695
    %v865 = vpow.pop %v864
    %v866 = vmul.f32 %v779, 1.442695
    %v867 = vpow.pop %v866
    %v868 = vmul.f32 %v780, 1.442695
    %v869 = vpow.pop %v868
    %v870 = vmul.f32 %v781, 1.442695
    %v871 = vpow.pop %v870
    %v872 = vmul.f32 %v782, 1.442695
    %v873 = vpow.pop %v872
    %v874 = vmul.f32 %v783, 1.442695
    %v875 = vpow.pop %v874
    %v876 = vmul.f32 %v784, 1.442695
    %v877 = vpow.pop %v876
    %v878 = vmul.f32 %v785, 1.442695
    %v879 = vpow.pop %v878
    %v880 = vmul.f32 %v786, 1.442695
    %v881 = vpow.pop %v880
    %v882 = vmul.f32 %v787, 1.442695
    %v883 = vpow.pop %v882
    %v884 = vmul.f32 %v788, 1.442695
    %v885 = vpow.pop %v884
    %v886 = vmul.f32 %v789, 1.442695
    %v887 = vpow.pop %v886
    %v888 = vmul.f32 %v790, 1.442695
    %v889 = vpow.pop %v888
    %v890 = vmul.f32 %v791, 1.442695
    %v891 = vpow.pop %v890
    %v892 = vmul.f32 %v792, 1.442695
    %v893 = vpow.pop %v892
    %v894 = vmul.f32 %v793, 1.442695
    %v895 = vpow.pop %v894
    %v896 = vmul.f32 %v794, 1.442695
    %v897 = vpow.pop %v896
    %v898 = vmul.f32 %v795, 1.442695
    %v899 = vpow.pop %v898
    %v900 = vmul.f32 %v796, 1.442695
    %v901 = vpow.pop %v900
    %v902 = vmul.f32 %v797, 1.442695
    %v903 = vpow.pop %v902
    %v904 = vmul.f32 %v798, 1.442695
    %v905 = vpow.pop %v904
    %v906 = vmul.f32 %v799, 1.442695
    %v907 = vpow.pop %v906
    %v908 = vmul.f32 %v800, 1.442695
    %v909 = vpow.pop %v908
    %v910 = vmul.f32 %v801, 1.442695
    %v911 = vpow.pop %v910
    %v912 = vmul.f32 %v802, 1.442695
    %v913 = vpow.pop %v912
    %v914 = vmul.f32 %v803, 1.442695
    %v915 = vpow.pop %v914
    %v916 = vmul.f32 %v804, 1.442695
    %v917 = vpow.pop %v916
    %v918 = vmul.f32 %v805, 1.442695
    %v919 = vpow.pop %v918
    %v920 = vmul.f32 %v806, 1.442695
    %v921 = vpow.pop %v920
    %v922 = vmul.f32 %v807, 1.442695
    %v923 = vpow.pop %v922
    %v924 = vmul.f32 %v808, 1.442695
    %v925 = vpow.pop %v924
    %v926 = vmul.f32 %v809, 1.442695
    %v927 = vpow.pop %v926
    %v928 = vmul.f32 %v810, 1.442695
    %v929 = vpow.pop %v928
    %v930 = vmul.f32 %v811, 1.442695
    %v931 = vpow.pop %v930
    %v932 = vmul.f32 %v812, 1.442695
    %v933 = vpow.pop %v932
    %v934 = vmul.f32 %v813, 1.442695
    %v935 = vpow.pop %v934
    %v936 = vmul.f32 %v814, 1.442695
    %v937 = vpow.pop %v936
    %v938 = vmul.f32 %v815, 1.442695
    %v939 = vpow.pop %v938
    %v940 = vmul.f32 %v816, 1.442695
    %v941 = vpow.pop %v940
    %v942 = vmul.f32 %v817, 1.442695
    %v943 = vpow.pop %v942
    %v944 = vmul.f32 %v818, 1.442695
    %v945 = vpow.pop %v944
    %v946 = vmul.f32 %v819, 1.442695
    %v947 = vpow.pop %v946
    %v948 = vadd.f32 %v821, 1.0
    %v949 = vadd.f32 %v823, 1.0
    %v950 = vadd.f32 %v825, 1.0
    %v951 = vadd.f32 %v827, 1.0
    %v952 = vadd.f32 %v829, 1.0
    %v953 = vadd.f32 %v831, 1.0
    %v954 = vadd.f32 %v833, 1.0
    %v955 = vadd.f32 %v835, 1.0
    %v956 = vadd.f32 %v837, 1.0
    %v957 = vadd.f32 %v839, 1.0
    %v958 = vadd.f32 %v841, 1.0
    %v959 = vadd.f32 %v843, 1.0
    %v960 = vadd.f32 %v845, 1.0
    %v961 = vadd.f32 %v847, 1.0
    %v962 = vadd.f32 %v849, 1.0
    %v963 = vadd.f32 %v851, 1.0
    %v964 = vadd.f32 %v853, 1.0
    %v965 = vadd.f32 %v855, 1.0
    %v966 = vadd.f32 %v857, 1.0
    %v967 = vadd.f32 %v859, 1.0
    %v968 = vadd.f32 %v861, 1.0
    %v969 = vadd.f32 %v863, 1.0
    %v970 = vadd.f32 %v865, 1.0
    %v971 = vadd.f32 %v867, 1.0
    %v972 = vadd.f32 %v869, 1.0
    %v973 = vadd.f32 %v871, 1.0
    %v974 = vadd.f32 %v873, 1.0
    %v975 = vadd.f32 %v875, 1.0
    %v976 = vadd.f32 %v877, 1.0
    %v977 = vadd.f32 %v879, 1.0
    %v978 = vadd.f32 %v881, 1.0
    %v979 = vadd.f32 %v883, 1.0
    %v980 = vadd.f32 %v885, 1.0
    %v981 = vadd.f32 %v887, 1.0
    %v982 = vadd.f32 %v889, 1.0
    %v983 = vadd.f32 %v891, 1.0
    %v984 = vadd.f32 %v893, 1.0
    %v985 = vadd.f32 %v895, 1.0
    %v986 = vadd.f32 %v897, 1.0
    %v987 = vadd.f32 %v899, 1.0
    %v988 = vadd.f32 %v901, 1.0
    %v989 = vadd.f32 %v903, 1.0
    %v990 = vadd.f32 %v905, 1.0
    %v991 = vadd.f32 %v907, 1.0
    %v992 = vadd.f32 %v909, 1.0
    %v993 = vadd.f32 %v911, 1.0
    %v994 = vadd.f32 %v913, 1.0
    %v995 = vadd.f32 %v915, 1.0
    %v996 = vadd.f32 %v917, 1.0
    %v997 = vadd.f32 %v919, 1.0
    %v998 = vadd.f32 %v921, 1.0
    %v999 = vadd.f32 %v923, 1.0
    %v1000 = vadd.f32 %v925, 1.0
    %v1001 = vadd.f32 %v927, 1.0
    %v1002 = vadd.f32 %v929, 1.0
    %v1003 = vadd.f32 %v931, 1.0
    %v1004 = vadd.f32 %v933, 1.0
    %v1005 = vadd.f32 %v935, 1.0
    %v1006 = vadd.f32 %v937, 1.0
    %v1007 = vadd.f32 %v939, 1.0
    %v1008 = vadd.f32 %v941, 1.0
    %v1009 = vadd.f32 %v943, 1.0
    %v1010 = vadd.f32 %v945, 1.0
    %v1011 = vadd.f32 %v947, 1.0
    %v1012 = vrcp.pop %v948
    %v1013 = vmul.f32 1.0, %v1012
    %v1014 = vrcp.pop %v949
    %v1015 = vmul.f32 1.0, %v1014
    %v1016 = vrcp.pop %v950
    %v1017 = vmul.f32 1.0, %v1016
    %v1018 = vrcp.pop %v951
    %v1019 = vmul.f32 1.0, %v1018
    %v1020 = vrcp.pop %v952
    %v1021 = vmul.f32 1.0, %v1020
    %v1022 = vrcp.pop %v953
    %v1023 = vmul.f32 1.0, %v1022
    %v1024 = vrcp.pop %v954
    %v1025 = vmul.f32 1.0, %v1024
    %v1026 = vrcp.pop %v955
    %v1027 = vmul.f32 1.0, %v1026
    %v1028 = vrcp.pop %v956
    %v1029 = vmul.f32 1.0, %v1028
    %v1030 = vrcp.pop %v957
    %v1031 = vmul.f32 1.0, %v1030
    %v1032 = vrcp.pop %v958
    %v1033 = vmul.f32 1.0, %v1032
    %v1034 = vrcp.pop %v959
    %v1035 = vmul.f32 1.0, %v1034
    %v1036 = vrcp.pop %v960
    %v1037 = vmul.f32 1.0, %v1036
    %v1038 = vrcp.pop %v961
    %v1039 = vmul.f32 1.0, %v1038
    %v1040 = vrcp.pop %v962
    %v1041 = vmul.f32 1.0, %v1040
    %v1042 = vrcp.pop %v963
    %v1043 = vmul.f32 1.0, %v1042
    %v1044 = vrcp.pop %v964
    %v1045 = vmul.f32 1.0, %v1044
    %v1046 = vrcp.pop %v965
    %v1047 = vmul.f32 1.0, %v1046
    %v1048 = vrcp.pop %v966
    %v1049 = vmul.f32 1.0, %v1048
    %v1050 = vrcp.pop %v967
    %v1051 = vmul.f32 1.0, %v1050
    %v1052 = vrcp.pop %v968
    %v1053 = vmul.f32 1.0, %v1052
    %v1054 = vrcp.pop %v969
    %v1055 = vmul.f32 1.0, %v1054
    %v1056 = vrcp.pop %v970
    %v1057 = vmul.f32 1.0, %v1056
    %v1058 = vrcp.pop %v971
    %v1059 = vmul.f32 1.0, %v1058
    %v1060 = vrcp.pop %v972
    %v1061 = vmul.f32 1.0, %v1060
    %v1062 = vrcp.pop %v973
    %v1063 = vmul.f32 1.0, %v1062
    %v1064 = vrcp.pop %v974
    %v1065 = vmul.f32 1.0, %v1064
    %v1066 = vrcp.pop %v975
    %v1067 = vmul.f32 1.0, %v1066
    %v1068 = vrcp.pop %v976
    %v1069 = vmul.f32 1.0, %v1068
    %v1070 = vrcp.pop %v977
    %v1071 = vmul.f32 1.0, %v1070
    %v1072 = vrcp.pop %v978
    %v1073 = vmul.f32 1.0, %v1072
    %v1074 = vrcp.pop %v979
    %v1075 = vmul.f32 1.0, %v1074
    %v1076 = vrcp.pop %v980
    %v1077 = vmul.f32 1.0, %v1076
    %v1078 = vrcp.pop %v981
    %v1079 = vmul.f32 1.0, %v1078
    %v1080 = vrcp.pop %v982
    %v1081 = vmul.f32 1.0, %v1080
    %v1082 = vrcp.pop %v983
    %v1083 = vmul.f32 1.0, %v1082
    %v1084 = vrcp.pop %v984
    %v1085 = vmul.f32 1.0, %v1084
    %v1086 = vrcp.pop %v985
    %v1087 = vmul.f32 1.0, %v1086
    %v1088 = vrcp.pop %v986
    %v1089 = vmul.f32 1.0, %v1088
    %v1090 = vrcp.pop %v987
    %v1091 = vmul.f32 1.0, %v1090
    %v1092 = vrcp.pop %v988
    %v1093 = vmul.f32 1.0, %v1092
    %v1094 = vrcp.pop %v989
    %v1095 = vmul.f32 1.0, %v1094
    %v1096 = vrcp.pop %v990
    %v1097 = vmul.f32 1.0, %v1096
    %v1098 = vrcp.pop %v991
    %v1099 = vmul.f32 1.0, %v1098
    %v1100 = vrcp.pop %v992
    %v1101 = vmul.f32 1.0, %v1100
    %v1102 = vrcp.pop %v993
    %v1103 = vmul.f32 1.0, %v1102
    %v1104 = vrcp.pop %v994
    %v1105 = vmul.f32 1.0, %v1104
    %v1106 = vrcp.pop %v995
    %v1107 = vmul.f32 1.0, %v1106
    %v1108 = vrcp.pop %v996
    %v1109 = vmul.f32 1.0, %v1108
    %v1110 = vrcp.pop %v997
    %v1111 = vmul.f32 1.0, %v1110
    %v1112 = vrcp.pop %v998
    %v1113 = vmul.f32 1.0, %v1112
    %v1114 = vrcp.pop %v999
    %v1115 = vmul.f32 1.0, %v1114
    %v1116 = vrcp.pop %v1000
    %v1117 = vmul.f32 1.0, %v1116
    %v1118 = vrcp.pop %v1001
    %v1119 = vmul.f32 1.0, %v1118
    %v1120 = vrcp.pop %v1002
    %v1121 = vmul.f32 1.0, %v1120
    %v1122 = vrcp.pop %v1003
    %v1123 = vmul.f32 1.0, %v1122
    %v1124 = vrcp.pop %v1004
    %v1125 = vmul.f32 1.0, %v1124
    %v1126 = vrcp.pop %v1005
    %v1127 = vmul.f32 1.0, %v1126
    %v1128 = vrcp.pop %v1006
    %v1129 = vmul.f32 1.0, %v1128
    %v1130 = vrcp.pop %v1007
    %v1131 = vmul.f32 1.0, %v1130
    %v1132 = vrcp.pop %v1008
    %v1133 = vmul.f32 1.0, %v1132
    %v1134 = vrcp.pop %v1009
    %v1135 = vmul.f32 1.0, %v1134
    %v1136 = vrcp.pop %v1010
    %v1137 = vmul.f32 1.0, %v1136
    %v1138 = vrcp.pop %v1011
    %v1139 = vmul.f32 1.0, %v1138
    %v1140 = vmul.f32 %v565, %v1013
    %v1141 = vmul.f32 %v567, %v1015
    %v1142 = vmul.f32 %v678, %v1017
    %v1143 = vmul.f32 %v680, %v1019
    %v1144 = vmul.f32 %v569, %v1021
    %v1145 = vmul.f32 %v571, %v1023
    %v1146 = vmul.f32 %v682, %v1025
    %v1147 = vmul.f32 %v684, %v1027
    %v1148 = vmul.f32 %v575, %v1029
    %v1149 = vmul.f32 %v577, %v1031
    %v1150 = vmul.f32 %v688, %v1033
    %v1151 = vmul.f32 %v690, %v1035
    %v1152 = vmul.f32 %v579, %v1037
    %v1153 = vmul.f32 %v581, %v1039
    %v1154 = vmul.f32 %v692, %v1041
    %v1155 = vmul.f32 %v694, %v1043
    %v1156 = vmul.f32 %v585, %v1045
    %v1157 = vmul.f32 %v587, %v1047
    %v1158 = vmul.f32 %v698, %v1049
    %v1159 = vmul.f32 %v700, %v1051
    %v1160 = vmul.f32 %v589, %v1053
    %v1161 = vmul.f32 %v591, %v1055
    %v1162 = vmul.f32 %v702, %v1057
    %v1163 = vmul.f32 %v704, %v1059
    %v1164 = vmul.f32 %v595, %v1061
    %v1165 = vmul.f32 %v597, %v1063
    %v1166 = vmul.f32 %v708, %v1065
    %v1167 = vmul.f32 %v710, %v1067
    %v1168 = vmul.f32 %v599, %v1069
    %v1169 = vmul.f32 %v601, %v1071
    %v1170 = vmul.f32 %v712, %v1073
    %v1171 = vmul.f32 %v714, %v1075
    %v1172 = vmul.f32 %v605, %v1077
    %v1173 = vmul.f32 %v607, %v1079
    %v1174 = vmul.f32 %v718, %v1081
    %v1175 = vmul.f32 %v720, %v1083
    %v1176 = vmul.f32 %v609, %v1085
    %v1177 = vmul.f32 %v611, %v1087
    %v1178 = vmul.f32 %v722, %v1089
    %v1179 = vmul.f32 %v724, %v1091
    %v1180 = vmul.f32 %v615, %v1093
    %v1181 = vmul.f32 %v617, %v1095
    %v1182 = vmul.f32 %v728, %v1097
    %v1183 = vmul.f32 %v730, %v1099
    %v1184 = vmul.f32 %v619, %v1101
    %v1185 = vmul.f32 %v621, %v1103
    %v1186 = vmul.f32 %v732, %v1105
    %v1187 = vmul.f32 %v734, %v1107
    %v1188 = vmul.f32 %v625, %v1109
    %v1189 = vmul.f32 %v627, %v1111
    %v1190 = vmul.f32 %v738, %v1113
    %v1191 = vmul.f32 %v740, %v1115
    %v1192 = vmul.f32 %v629, %v1117
    %v1193 = vmul.f32 %v631, %v1119
    %v1194 = vmul.f32 %v742, %v1121
    %v1195 = vmul.f32 %v744, %v1123
    %v1196 = vmul.f32 %v635, %v1125
    %v1197 = vmul.f32 %v637, %v1127
    %v1198 = vmul.f32 %v748, %v1129
    %v1199 = vmul.f32 %v750, %v1131
    %v1200 = vmul.f32 %v639, %v1133
    %v1201 = vmul.f32 %v641, %v1135
    %v1202 = vmul.f32 %v752, %v1137
    %v1203 = vmul.f32 %v754, %v1139
    %v1204 = vpack.c.bf16 %v1144, %v1140
    %v1205 = vpack.c.bf16 %v1145, %v1141
    %v1206 = vpack.c.bf16 %v1146, %v1142
    %v1207 = vpack.c.bf16 %v1147, %v1143
    %v1208 = vpack.c.bf16 %v1152, %v1148
    %v1209 = vpack.c.bf16 %v1153, %v1149
    %v1210 = vpack.c.bf16 %v1154, %v1150
    %v1211 = vpack.c.bf16 %v1155, %v1151
    %v1212 = vpack.c.bf16 %v1160, %v1156
    %v1213 = vpack.c.bf16 %v1161, %v1157
    %v1214 = vpack.c.bf16 %v1162, %v1158
    %v1215 = vpack.c.bf16 %v1163, %v1159
    %v1216 = vpack.c.bf16 %v1168, %v1164
    %v1217 = vpack.c.bf16 %v1169, %v1165
    %v1218 = vpack.c.bf16 %v1170, %v1166
    %v1219 = vpack.c.bf16 %v1171, %v1167
    %v1220 = vpack.c.bf16 %v1176, %v1172
    %v1221 = vpack.c.bf16 %v1177, %v1173
    %v1222 = vpack.c.bf16 %v1178, %v1174
    %v1223 = vpack.c.bf16 %v1179, %v1175
    %v1224 = vpack.c.bf16 %v1184, %v1180
    %v1225 = vpack.c.bf16 %v1185, %v1181
    %v1226 = vpack.c.bf16 %v1186, %v1182
    %v1227 = vpack.c.bf16 %v1187, %v1183
    %v1228 = vpack.c.bf16 %v1192, %v1188
    %v1229 = vpack.c.bf16 %v1193, %v1189
    %v1230 = vpack.c.bf16 %v1194, %v1190
    %v1231 = vpack.c.bf16 %v1195, %v1191
    %v1232 = vpack.c.bf16 %v1200, %v1196
    %v1233 = vpack.c.bf16 %v1201, %v1197
    %v1234 = vpack.c.bf16 %v1202, %v1198
    %v1235 = vpack.c.bf16 %v1203, %v1199
    %v1236 = vld [vmem:[#allocation7] sm:$0xf]
    %v1237 = vld [vmem:[#allocation7 + $0x4] sm:$0xf]
    %v1238 = vld [vmem:[#allocation7 + $0x8] sm:$0xf]
    %v1239 = vld [vmem:[#allocation7 + $0xc] sm:$0xf]
    %v1240 = vld [vmem:[#allocation7 + $0x10] sm:$0xf]
    %v1241 = vld [vmem:[#allocation7 + $0x14] sm:$0xf]
    %v1242 = vld [vmem:[#allocation7 + $0x18] sm:$0xf]
    %v1243 = vld [vmem:[#allocation7 + $0x1c] sm:$0xf]
    %v1244 = vld [vmem:[#allocation7 + $0x20] sm:$0xf]
    %v1245 = vld [vmem:[#allocation7 + $0x24] sm:$0xf]
    %v1246 = vld [vmem:[#allocation7 + $0x28] sm:$0xf]
    %v1247 = vld [vmem:[#allocation7 + $0x2c] sm:$0xf]
    %v1248 = vld [vmem:[#allocation7 + $0x30] sm:$0xf]
    %v1249 = vld [vmem:[#allocation7 + $0x34] sm:$0xf]
    %v1250 = vld [vmem:[#allocation7 + $0x38] sm:$0xf]
    %v1251 = vld [vmem:[#allocation7 + $0x3c] sm:$0xf]
    %v1252 = vld [vmem:[#allocation7 + $0x40] sm:$0xf]
    %v1253 = vld [vmem:[#allocation7 + $0x44] sm:$0xf]
    %v1254 = vld [vmem:[#allocation7 + $0x48] sm:$0xf]
    %v1255 = vld [vmem:[#allocation7 + $0x4c] sm:$0xf]
    %v1256 = vld [vmem:[#allocation7 + $0x50] sm:$0xf]
    %v1257 = vld [vmem:[#allocation7 + $0x54] sm:$0xf]
    %v1258 = vld [vmem:[#allocation7 + $0x58] sm:$0xf]
    %v1259 = vld [vmem:[#allocation7 + $0x5c] sm:$0xf]
    %v1260 = vld [vmem:[#allocation7 + $0x60] sm:$0xf]
    %v1261 = vld [vmem:[#allocation7 + $0x64] sm:$0xf]
    %v1262 = vld [vmem:[#allocation7 + $0x68] sm:$0xf]
    %v1263 = vld [vmem:[#allocation7 + $0x6c] sm:$0xf]
    %v1264 = vld [vmem:[#allocation7 + $0x70] sm:$0xf]
    %v1265 = vld [vmem:[#allocation7 + $0x74] sm:$0xf]
    %v1266 = vld [vmem:[#allocation7 + $0x78] sm:$0xf]
    %v1267 = vld [vmem:[#allocation7 + $0x7c] sm:$0xf]
    %v1268 = vld [vmem:[#allocation7 + $0x80] sm:$0xf]
    %v1269 = vld [vmem:[#allocation7 + $0x84] sm:$0xf]
    %v1270 = vld [vmem:[#allocation7 + $0x88] sm:$0xf]
    %v1271 = vld [vmem:[#allocation7 + $0x8c] sm:$0xf]
    %v1272 = vld [vmem:[#allocation7 + $0x90] sm:$0xf]
    %v1273 = vld [vmem:[#allocation7 + $0x94] sm:$0xf]
    %v1274 = vld [vmem:[#allocation7 + $0x98] sm:$0xf]
    %v1275 = vld [vmem:[#allocation7 + $0x9c] sm:$0xf]
    %v1276 = vld [vmem:[#allocation7 + $0xa0] sm:$0xf]
    %v1277 = vld [vmem:[#allocation7 + $0xa4] sm:$0xf]
    %v1278 = vld [vmem:[#allocation7 + $0xa8] sm:$0xf]
    %v1279 = vld [vmem:[#allocation7 + $0xac] sm:$0xf]
    %v1280 = vld [vmem:[#allocation7 + $0xb0] sm:$0xf]
    %v1281 = vld [vmem:[#allocation7 + $0xb4] sm:$0xf]
    %v1282 = vld [vmem:[#allocation7 + $0xb8] sm:$0xf]
    %v1283 = vld [vmem:[#allocation7 + $0xbc] sm:$0xf]
    %v1284 = vld [vmem:[#allocation7 + $0xc0] sm:$0xf]
    %v1285 = vld [vmem:[#allocation7 + $0xc4] sm:$0xf]
    %v1286 = vld [vmem:[#allocation7 + $0xc8] sm:$0xf]
    %v1287 = vld [vmem:[#allocation7 + $0xcc] sm:$0xf]
    %v1288 = vld [vmem:[#allocation7 + $0xd0] sm:$0xf]
    %v1289 = vld [vmem:[#allocation7 + $0xd4] sm:$0xf]
    %v1290 = vld [vmem:[#allocation7 + $0xd8] sm:$0xf]
    %v1291 = vld [vmem:[#allocation7 + $0xdc] sm:$0xf]
    %v1292 = vld [vmem:[#allocation7 + $0xe0] sm:$0xf]
    %v1293 = vld [vmem:[#allocation7 + $0xe4] sm:$0xf]
    %v1294 = vld [vmem:[#allocation7 + $0xe8] sm:$0xf]
    %v1295 = vld [vmem:[#allocation7 + $0xec] sm:$0xf]
    %v1296 = vld [vmem:[#allocation7 + $0xf0] sm:$0xf]
    %v1297 = vld [vmem:[#allocation7 + $0xf4] sm:$0xf]
    %v1298 = vld [vmem:[#allocation7 + $0xf8] sm:$0xf]
    %v1299 = vld [vmem:[#allocation7 + $0xfc] sm:$0xf]
    %v1300 = vld [vmem:[%s6] sm:$0x1]
    %v1302 = vlaneseq
    %v1303 = vshrl.u32 %v1302, 7
    %v1304 = vsub.s32 0, %v1303
    %v1305 = vrot.slane %v1300, %v1304
    %v1371 = vunpack.c.l.b16 %v1236
    %v1372 = vunpack.c.l.b16 %v1237
    %v1373 = vunpack.c.l.b16 %v1238
    %v1374 = vunpack.c.l.b16 %v1239
    %v1375 = vunpack.c.l.b16 %v1240
    %v1376 = vunpack.c.l.b16 %v1241
    %v1377 = vunpack.c.l.b16 %v1242
    %v1378 = vunpack.c.l.b16 %v1243
    %v1379 = vunpack.c.l.b16 %v1244
    %v1380 = vunpack.c.l.b16 %v1245
    %v1381 = vunpack.c.l.b16 %v1246
    %v1382 = vunpack.c.l.b16 %v1247
    %v1383 = vunpack.c.l.b16 %v1248
    %v1384 = vunpack.c.l.b16 %v1249
    %v1385 = vunpack.c.l.b16 %v1250
    %v1386 = vunpack.c.l.b16 %v1251
    %v1387 = vunpack.c.l.b16 %v1252
    %v1388 = vunpack.c.l.b16 %v1253
    %v1389 = vunpack.c.l.b16 %v1254
    %v1390 = vunpack.c.l.b16 %v1255
    %v1391 = vunpack.c.l.b16 %v1256
    %v1392 = vunpack.c.l.b16 %v1257
    %v1393 = vunpack.c.l.b16 %v1258
    %v1394 = vunpack.c.l.b16 %v1259
    %v1395 = vunpack.c.l.b16 %v1260
    %v1396 = vunpack.c.l.b16 %v1261
    %v1397 = vunpack.c.l.b16 %v1262
    %v1398 = vunpack.c.l.b16 %v1263
    %v1399 = vunpack.c.l.b16 %v1264
    %v1400 = vunpack.c.l.b16 %v1265
    %v1401 = vunpack.c.l.b16 %v1266
    %v1402 = vunpack.c.l.b16 %v1267
    %v1403 = vunpack.c.l.b16 %v1268
    %v1404 = vunpack.c.l.b16 %v1269
    %v1405 = vunpack.c.l.b16 %v1270
    %v1406 = vunpack.c.l.b16 %v1271
    %v1407 = vunpack.c.l.b16 %v1272
    %v1408 = vunpack.c.l.b16 %v1273
    %v1409 = vunpack.c.l.b16 %v1274
    %v1410 = vunpack.c.l.b16 %v1275
    %v1411 = vunpack.c.l.b16 %v1276
    %v1412 = vunpack.c.l.b16 %v1277
    %v1413 = vunpack.c.l.b16 %v1278
    %v1414 = vunpack.c.l.b16 %v1279
    %v1415 = vunpack.c.l.b16 %v1280
    %v1416 = vunpack.c.l.b16 %v1281
    %v1417 = vunpack.c.l.b16 %v1282
    %v1418 = vunpack.c.l.b16 %v1283
    %v1419 = vunpack.c.l.b16 %v1284
    %v1420 = vunpack.c.l.b16 %v1285
    %v1421 = vunpack.c.l.b16 %v1286
    %v1422 = vunpack.c.l.b16 %v1287
    %v1423 = vunpack.c.l.b16 %v1288
    %v1424 = vunpack.c.l.b16 %v1289
    %v1425 = vunpack.c.l.b16 %v1290
    %v1426 = vunpack.c.l.b16 %v1291
    %v1427 = vunpack.c.l.b16 %v1292
    %v1428 = vunpack.c.l.b16 %v1293
    %v1429 = vunpack.c.l.b16 %v1294
    %v1430 = vunpack.c.l.b16 %v1295
    %v1431 = vunpack.c.l.b16 %v1296
    %v1432 = vunpack.c.l.b16 %v1297
    %v1433 = vunpack.c.l.b16 %v1298
    %v1434 = vunpack.c.l.b16 %v1299
    %v1435 = vpack.c.b16 %v1372, %v1371
    %v1436 = vpack.c.b16 %v1374, %v1373
    %v1437 = vpack.c.b16 %v1376, %v1375
    %v1438 = vpack.c.b16 %v1378, %v1377
    %v1439 = vpack.c.b16 %v1380, %v1379
    %v1440 = vpack.c.b16 %v1382, %v1381
    %v1441 = vpack.c.b16 %v1384, %v1383
    %v1442 = vpack.c.b16 %v1386, %v1385
    %v1443 = vpack.c.b16 %v1388, %v1387
    %v1444 = vpack.c.b16 %v1390, %v1389
    %v1445 = vpack.c.b16 %v1392, %v1391
    %v1446 = vpack.c.b16 %v1394, %v1393
    %v1447 = vpack.c.b16 %v1396, %v1395
    %v1448 = vpack.c.b16 %v1398, %v1397
    %v1449 = vpack.c.b16 %v1400, %v1399
    %v1450 = vpack.c.b16 %v1402, %v1401
    %v1451 = vpack.c.b16 %v1404, %v1403
    %v1452 = vpack.c.b16 %v1406, %v1405
    %v1453 = vpack.c.b16 %v1408, %v1407
    %v1454 = vpack.c.b16 %v1410, %v1409
    %v1455 = vpack.c.b16 %v1412, %v1411
    %v1456 = vpack.c.b16 %v1414, %v1413
    %v1457 = vpack.c.b16 %v1416, %v1415
    %v1458 = vpack.c.b16 %v1418, %v1417
    %v1459 = vpack.c.b16 %v1420, %v1419
    %v1460 = vpack.c.b16 %v1422, %v1421
    %v1461 = vpack.c.b16 %v1424, %v1423
    %v1462 = vpack.c.b16 %v1426, %v1425
    %v1463 = vpack.c.b16 %v1428, %v1427
    %v1464 = vpack.c.b16 %v1430, %v1429
    %v1465 = vpack.c.b16 %v1432, %v1431
    %v1466 = vpack.c.b16 %v1434, %v1433
    %1499 = vmatprep.subr.bf16.mxu0 0
    %1500 = vmatpush1.bf16.msra.mxu0 %v1435
    %1501 = vmatprep.subr.bf16.mxu0 0
    %1502 = vmatpush1.bf16.msra.mxu0 %v1436
    %1503 = vmatprep.subr.bf16.mxu0 0
    %1504 = vmatpush1.bf16.msra.mxu0 %v1437
    %1505 = vmatprep.subr.bf16.mxu0 0
    %1506 = vmatpush1.bf16.msra.mxu0 %v1438
    %1507 = vmatprep.subr.bf16.mxu0 0
    %1508 = vmatpush1.bf16.msra.mxu0 %v1439
    %1509 = vmatprep.subr.bf16.mxu0 0
    %1510 = vmatpush1.bf16.msra.mxu0 %v1440
    %1511 = vmatprep.subr.bf16.mxu0 0
    %1512 = vmatpush1.bf16.msra.mxu0 %v1441
    %1513 = vmatprep.subr.bf16.mxu0 0
    %1514 = vmatpush1.bf16.msra.mxu0 %v1442
    %1515 = vmatprep.subr.bf16.mxu0 0
    %1516 = vmatpush1.bf16.msra.mxu0 %v1443
    %1517 = vmatprep.subr.bf16.mxu0 0
    %1518 = vmatpush1.bf16.msra.mxu0 %v1444
    %1519 = vmatprep.subr.bf16.mxu0 0
    %1520 = vmatpush1.bf16.msra.mxu0 %v1445
    %1521 = vmatprep.subr.bf16.mxu0 0
    %1522 = vmatpush1.bf16.msra.mxu0 %v1446
    %1523 = vmatprep.subr.bf16.mxu0 0
    %1524 = vmatpush1.bf16.msra.mxu0 %v1447
    %1525 = vmatprep.subr.bf16.mxu0 0
    %1526 = vmatpush1.bf16.msra.mxu0 %v1448
    %1527 = vmatprep.subr.bf16.mxu0 0
    %1528 = vmatpush1.bf16.msra.mxu0 %v1449
    %1529 = vmatprep.subr.bf16.mxu0 0
    %1530 = vmatpush1.bf16.msra.mxu0 %v1450
    %1531 = vmatprep.mubr.bf16.mxu0 %v1205
    %1532 = vmatmul.mubr.bf16.gmra.mrb[0].mxu0 %v1204
    %v1533 = vpop.f32.mrb[0].mxu0
    %v1534 = vadd.f32 %v1305, %v1533
    %v1535 = vpop.f32.mrb[0].mxu0
    %v1536 = vpop.f32.mrb[0].mxu0
    %v1537 = vadd.f32 %v1305, %v1536
    %v1538 = vpop.f32.mrb[0].mxu0
    %1539 = vmatprep.mubr.bf16.mxu0 %v1209
    %1540 = vmatmul.mubr.bf16.gmra.mrb[0].mxu0 %v1208
    %v1541 = vpop.f32.mrb[0].mxu0
    %v1542 = vadd.f32 %v1305, %v1541
    %v1543 = vpop.f32.mrb[0].mxu0
    %v1544 = vpop.f32.mrb[0].mxu0
    %v1545 = vadd.f32 %v1305, %v1544
    %v1546 = vpop.f32.mrb[0].mxu0
    %1547 = vmatprep.mubr.bf16.mxu0 %v1213
    %1548 = vmatmul.mubr.bf16.gmra.mrb[0].mxu0 %v1212
    %v1549 = vpop.f32.mrb[0].mxu0
    %v1550 = vadd.f32 %v1305, %v1549
    %v1551 = vpop.f32.mrb[0].mxu0
    %v1552 = vpop.f32.mrb[0].mxu0
    %v1553 = vadd.f32 %v1305, %v1552
    %v1554 = vpop.f32.mrb[0].mxu0
    %1555 = vmatprep.mubr.bf16.mxu0 %v1217
    %1556 = vmatmul.mubr.bf16.gmra.mrb[0].mxu0 %v1216
    %v1557 = vpop.f32.mrb[0].mxu0
    %v1558 = vadd.f32 %v1305, %v1557
    %v1559 = vpop.f32.mrb[0].mxu0
    %v1560 = vpop.f32.mrb[0].mxu0
    %v1561 = vadd.f32 %v1305, %v1560
    %v1562 = vpop.f32.mrb[0].mxu0
    %1563 = vmatprep.mubr.bf16.mxu0 %v1221
    %1564 = vmatmul.mubr.bf16.gmra.mrb[0].mxu0 %v1220
    %v1565 = vpop.f32.mrb[0].mxu0
    %v1566 = vadd.f32 %v1305, %v1565
    %v1567 = vpop.f32.mrb[0].mxu0
    %v1568 = vpop.f32.mrb[0].mxu0
    %v1569 = vadd.f32 %v1305, %v1568
    %v1570 = vpop.f32.mrb[0].mxu0
    %1571 = vmatprep.mubr.bf16.mxu0 %v1225
    %1572 = vmatmul.mubr.bf16.gmra.mrb[0].mxu0 %v1224
    %v1573 = vpop.f32.mrb[0].mxu0
    %v1574 = vadd.f32 %v1305, %v1573
    %v1575 = vpop.f32.mrb[0].mxu0
    %v1576 = vpop.f32.mrb[0].mxu0
    %v1577 = vadd.f32 %v1305, %v1576
    %v1578 = vpop.f32.mrb[0].mxu0
    %1579 = vmatprep.mubr.bf16.mxu0 %v1229
    %1580 = vmatmul.mubr.bf16.gmra.mrb[0].mxu0 %v1228
    %v1581 = vpop.f32.mrb[0].mxu0
    %v1582 = vadd.f32 %v1305, %v1581
    %v1583 = vpop.f32.mrb[0].mxu0
    %v1584 = vpop.f32.mrb[0].mxu0
    %v1585 = vadd.f32 %v1305, %v1584
    %v1586 = vpop.f32.mrb[0].mxu0
    %1587 = vmatprep.mubr.bf16.mxu0 %v1233
    %1588 = vmatmul.mubr.bf16.gmra.mrb[0].mxu0 %v1232
    %v1589 = vpop.f32.mrb[0].mxu0
    %v1590 = vadd.f32 %v1305, %v1589
    %v1591 = vpop.f32.mrb[0].mxu0
    %v1592 = vpop.f32.mrb[0].mxu0
    %v1593 = vadd.f32 %v1305, %v1592
    %v1594 = vpop.f32.mrb[0].mxu0
    %1595 = vdwg.mxu0
    %1596 = vmatprep.subr.bf16.mxu0 0
    %1597 = vmatpush1.bf16.msra.mxu0 %v1451
    %1598 = vmatprep.subr.bf16.mxu0 0
    %1599 = vmatpush1.bf16.msra.mxu0 %v1452
    %1600 = vmatprep.subr.bf16.mxu0 0
    %1601 = vmatpush1.bf16.msra.mxu0 %v1453
    %1602 = vmatprep.subr.bf16.mxu0 0
    %1603 = vmatpush1.bf16.msra.mxu0 %v1454
    %1604 = vmatprep.subr.bf16.mxu0 0
    %1605 = vmatpush1.bf16.msra.mxu0 %v1455
    %1606 = vmatprep.subr.bf16.mxu0 0
    %1607 = vmatpush1.bf16.msra.mxu0 %v1456
    %1608 = vmatprep.subr.bf16.mxu0 0
    %1609 = vmatpush1.bf16.msra.mxu0 %v1457
    %1610 = vmatprep.subr.bf16.mxu0 0
    %1611 = vmatpush1.bf16.msra.mxu0 %v1458
    %1612 = vmatprep.subr.bf16.mxu0 0
    %1613 = vmatpush1.bf16.msra.mxu0 %v1459
    %1614 = vmatprep.subr.bf16.mxu0 0
    %1615 = vmatpush1.bf16.msra.mxu0 %v1460
    %1616 = vmatprep.subr.bf16.mxu0 0
    %1617 = vmatpush1.bf16.msra.mxu0 %v1461
    %1618 = vmatprep.subr.bf16.mxu0 0
    %1619 = vmatpush1.bf16.msra.mxu0 %v1462
    %1620 = vmatprep.subr.bf16.mxu0 0
    %1621 = vmatpush1.bf16.msra.mxu0 %v1463
    %1622 = vmatprep.subr.bf16.mxu0 0
    %1623 = vmatpush1.bf16.msra.mxu0 %v1464
    %1624 = vmatprep.subr.bf16.mxu0 0
    %1625 = vmatpush1.bf16.msra.mxu0 %v1465
    %1626 = vmatprep.subr.bf16.mxu0 0
    %1627 = vmatpush1.bf16.msra.mxu0 %v1466
    %1628 = vmatprep.mubr.bf16.mxu0 %v1207
    %1629 = vmatmul.mubr.bf16.gmra.mrb[0].mxu0 %v1206
    %v1630 = vpop.f32.mrb[0].mxu0
    %v1631 = vadd.f32 %v1534, %v1630
    %v1632 = vpop.f32.mrb[0].mxu0
    %v1633 = vpop.f32.mrb[0].mxu0
    %v1634 = vadd.f32 %v1537, %v1633
    %v1635 = vpop.f32.mrb[0].mxu0
    %1636 = vmatprep.mubr.bf16.mxu0 %v1211
    %1637 = vmatmul.mubr.bf16.gmra.mrb[0].mxu0 %v1210
    %v1638 = vpop.f32.mrb[0].mxu0
    %v1639 = vadd.f32 %v1542, %v1638
    %v1640 = vpop.f32.mrb[0].mxu0
    %v1641 = vpop.f32.mrb[0].mxu0
    %v1642 = vadd.f32 %v1545, %v1641
    %v1643 = vpop.f32.mrb[0].mxu0
    %1644 = vmatprep.mubr.bf16.mxu0 %v1215
    %1645 = vmatmul.mubr.bf16.gmra.mrb[0].mxu0 %v1214
    %v1646 = vpop.f32.mrb[0].mxu0
    %v1647 = vadd.f32 %v1550, %v1646
    %v1648 = vpop.f32.mrb[0].mxu0
    %v1649 = vpop.f32.mrb[0].mxu0
    %v1650 = vadd.f32 %v1553, %v1649
    %v1651 = vpop.f32.mrb[0].mxu0
    %1652 = vmatprep.mubr.bf16.mxu0 %v1219
    %1653 = vmatmul.mubr.bf16.gmra.mrb[0].mxu0 %v1218
    %v1654 = vpop.f32.mrb[0].mxu0
    %v1655 = vadd.f32 %v1558, %v1654
    %v1656 = vpop.f32.mrb[0].mxu0
    %v1657 = vpop.f32.mrb[0].mxu0
    %v1658 = vadd.f32 %v1561, %v1657
    %v1659 = vpop.f32.mrb[0].mxu0
    %1660 = vmatprep.mubr.bf16.mxu0 %v1223
    %1661 = vmatmul.mubr.bf16.gmra.mrb[0].mxu0 %v1222
    %v1662 = vpop.f32.mrb[0].mxu0
    %v1663 = vadd.f32 %v1566, %v1662
    %v1664 = vpop.f32.mrb[0].mxu0
    %v1665 = vpop.f32.mrb[0].mxu0
    %v1666 = vadd.f32 %v1569, %v1665
    %v1667 = vpop.f32.mrb[0].mxu0
    %1668 = vmatprep.mubr.bf16.mxu0 %v1227
    %1669 = vmatmul.mubr.bf16.gmra.mrb[0].mxu0 %v1226
    %v1670 = vpop.f32.mrb[0].mxu0
    %v1671 = vadd.f32 %v1574, %v1670
    %v1672 = vpop.f32.mrb[0].mxu0
    %v1673 = vpop.f32.mrb[0].mxu0
    %v1674 = vadd.f32 %v1577, %v1673
    %v1675 = vpop.f32.mrb[0].mxu0
    %1676 = vmatprep.mubr.bf16.mxu0 %v1231
    %1677 = vmatmul.mubr.bf16.gmra.mrb[0].mxu0 %v1230
    %v1678 = vpop.f32.mrb[0].mxu0
    %v1679 = vadd.f32 %v1582, %v1678
    %v1680 = vpop.f32.mrb[0].mxu0
    %v1681 = vpop.f32.mrb[0].mxu0
    %v1682 = vadd.f32 %v1585, %v1681
    %v1683 = vpop.f32.mrb[0].mxu0
    %1684 = vmatprep.mubr.bf16.mxu0 %v1235
    %1685 = vmatmul.mubr.bf16.gmra.mrb[0].mxu0 %v1234
    %v1686 = vpop.f32.mrb[0].mxu0
    %v1687 = vadd.f32 %v1590, %v1686
    %v1688 = vpop.f32.mrb[0].mxu0
    %v1689 = vpop.f32.mrb[0].mxu0
    %v1690 = vadd.f32 %v1593, %v1689
    %v1691 = vpop.f32.mrb[0].mxu0
    %1692 = vdwg.mxu0
    %1693 = vst [vmem:[#allocation8] sm:$0xff] %v1631
    %1694 = vst [vmem:[#allocation8 + $0x8] sm:$0xff] %v1634
    %1695 = vst [vmem:[#allocation8 + $0x10] sm:$0xff] %v1639
    %1696 = vst [vmem:[#allocation8 + $0x18] sm:$0xff] %v1642
    %1697 = vst [vmem:[#allocation8 + $0x20] sm:$0xff] %v1647
    %1698 = vst [vmem:[#allocation8 + $0x28] sm:$0xff] %v1650
    %1699 = vst [vmem:[#allocation8 + $0x30] sm:$0xff] %v1655
    %1700 = vst [vmem:[#allocation8 + $0x38] sm:$0xff] %v1658
    %1701 = vst [vmem:[#allocation8 + $0x40] sm:$0xff] %v1663
    %1702 = vst [vmem:[#allocation8 + $0x48] sm:$0xff] %v1666
    %1703 = vst [vmem:[#allocation8 + $0x50] sm:$0xff] %v1671
    %1704 = vst [vmem:[#allocation8 + $0x58] sm:$0xff] %v1674
    %1705 = vst [vmem:[#allocation8 + $0x60] sm:$0xff] %v1679
    %1706 = vst [vmem:[#allocation8 + $0x68] sm:$0xff] %v1682
    %1707 = vst [vmem:[#allocation8 + $0x70] sm:$0xff] %v1687
    %1708 = vst [vmem:[#allocation8 + $0x78] sm:$0xff] %v1690
    // Predicated region
    $region42: #{feed_forward.1} parent=1 // pred_check
      _
    $region43: #{feed_forward.1} parent=1 // pred_check_branch
      %1710 = sbr.rel (0) target = $region45
    $region44: #{feed_forward.1} parent=1 // pred_region
      %s1712 = ssub.s32 2048, 2048
      %1713 = vsyncadd [#allocation4], %s1712
      %s1714 = sshll.u32 [#allocation8], 4
      %s1715 = int_to_ptr.vmem [resolvable:$true] %s1714
      %1720 = dma.vmem_to_hbm [thread:$0]  %s1715, 2048, %s7, [#allocation4], 128, 128, 8
    $region45: #{feed_forward.1} parent=1 // pred_fallthru
      _
    // Predicated region
    $region46: #{feed_forward.1} parent=1 // pred_check
      _
    $region47: #{feed_forward.1} parent=1 // pred_check_branch
      %1722 = sbr.rel (0) target = $region49
    $region48: #{feed_forward.1} parent=1 // pred_region
      %1723 = dma.done [#allocation4], 2048
    $region49: #{feed_forward.1} parent=1 // pred_fallthru
      _
    %1724 = vsyncpa [#allocation3], 1
    %1725 = vsyncpa [#allocation6], 1
    %1726 = vsyncpa [#allocation4], 1

</llo_original>
